<compile_context>
chip_gen: v5e
topology: v5e:2x2
jax: 0.10.0
libtpu: 0.0.40
codegen_flags: <defaults>
</compile_context>

<pallas_src>
import functools

import jax
import jax.numpy as jnp
import numpy as np
from jax.experimental import pallas as pl
from jax.experimental.pallas import tpu as pltpu

LANE = 128            # TPU lane width; activation/weight lane dims pad to this.
MAX_BATCH_BLOCK = 256  # per-grid-step batch tile (= matmul M)


def _round_up(n, m):
    return ((n + m - 1) // m) * m


# --------------------------------------------------------------------------
# Fused forward kernel: every layer (conv-as-Toeplitz or FC) is one matmul.
# --------------------------------------------------------------------------
def _ddqn_kernel(n_layers, x_ref, *refs):
    """x_ref: (Bblk, feat_pad) bf16.  refs: [W0,b0, ..., W_{n-1},b_{n-1}, q_ref]."""
    q_ref = refs[2 * n_layers]
    h = x_ref[...]                                    # (Bblk, K0) bf16
    for l in range(n_layers):
        w_ref, b_ref = refs[2 * l], refs[2 * l + 1]
        acc = jnp.dot(h, w_ref[...], preferred_element_type=jnp.float32)
        acc = acc + b_ref[...]                        # (Bblk, N) f32
        if l < n_layers - 1:
            h = jnp.maximum(acc, 0.0).astype(jnp.bfloat16)
        else:
            q_ref[...] = acc                          # final layer: no ReLU


@functools.partial(jax.jit, static_argnames=("num_actions",))
def ddqn_forward(packed, x, *, num_actions):
    """x: (B, C, H, W) float32 NCHW (PyTorch convention) -> (B, num_actions)."""
    b = x.shape[0]
    feat = int(np.prod(x.shape[1:]))
    layers = packed["layers"]
    n_layers = len(layers)
    feat_pad = layers[0][0].shape[0]       # K of the first Toeplitz matmul
    out_pad = layers[-1][0].shape[1]       # padded action lanes (>=128)

    # torch NCHW flatten order, bf16, features zero-padded to the packed K.
    x_flat = x.reshape(b, feat).astype(jnp.bfloat16)
    if feat_pad != feat:
        x_flat = jnp.pad(x_flat, ((0, 0), (0, feat_pad - feat)))

    bblk = min(MAX_BATCH_BLOCK, _round_up(b, 8))
    b_pad = _round_up(b, bblk)
    if b_pad != b:
        x_flat = jnp.pad(x_flat, ((0, b_pad - b), (0, 0)))

    def _const_spec(shape):
        zeros = (0,) * len(shape)
        return pl.BlockSpec(shape, lambda i, _z=zeros: _z)

    args = [x_flat]
    in_specs = [pl.BlockSpec((bblk, feat_pad), lambda i: (i, 0))]
    for (wp, bp) in layers:
        args += [wp, bp]
        in_specs += [_const_spec(wp.shape), _const_spec(bp.shape)]

    q_pad = pl.pallas_call(
        functools.partial(_ddqn_kernel, n_layers),
        out_shape=jax.ShapeDtypeStruct((b_pad, out_pad), jnp.float32),
        grid=(b_pad // bblk,),
        in_specs=in_specs,
        out_specs=pl.BlockSpec((bblk, out_pad), lambda i: (i, 0)),
        compiler_params=pltpu.CompilerParams(
            dimension_semantics=("parallel",)),   # v7x: batch blocks on both TCs
    )(*args)
    return q_pad[:b, :num_actions]


def ddqn_target_forward(packed_target, x, *, num_actions):
    # targetForward: identical net with hard-copied params (torch_utils.hardUpdate).
    return ddqn_forward(packed_target, x, num_actions=num_actions)


# --------------------------------------------------------------------------
# Parameter init (torch-style layout) and one-time packing for the kernel.
# --------------------------------------------------------------------------
def init_params(key, state_shape, num_actions, conv_filters, fc_hidden):
    c, h, w = state_shape
    params = {"conv": [], "fc": []}
    prev, sp = c, h
    for f in conv_filters:
        key, k1, k2 = jax.random.split(key, 3)
        bound = 1.0 / np.sqrt(prev * 9)
        wgt = jax.random.uniform(k1, (f, prev, 3, 3), jnp.float32, -bound, bound)
        bia = jax.random.uniform(k2, (f,), jnp.float32, -bound, bound)
        params["conv"].append((wgt, bia))
        prev = f
        sp = (sp + 2 - 3) // 2 + 1
    dims = [prev * sp * sp, fc_hidden, num_actions]
    for i in range(2):
        key, k1, k2 = jax.random.split(key, 3)
        bound = 1.0 / np.sqrt(dims[i])
        wgt = jax.random.uniform(k1, (dims[i], dims[i + 1]), jnp.float32, -bound, bound)
        bia = jax.random.uniform(k2, (dims[i + 1],), jnp.float32, -bound, bound)
        params["fc"].append((wgt, bia))
    return params


def pack_params(params, state_shape):
    """One-time repack of torch-layout params into lane-dense matmul operands.

    Each conv layer becomes a dense Toeplitz matrix mapping the NCHW-flattened
    input activation directly to the NCHW-flattened output activation
    (out-of-bounds taps simply contribute nothing, so no halo padding exists at
    run time), plus a spatially-broadcast bias row.  FC layers are zero-padded
    to the same lane widths.  Matmul operands are bf16; biases stay f32.
    Padded weight columns / bias entries are zero, so padded activation lanes
    stay exactly zero through every layer.
    """
    c, h, w = state_shape
    cin, hh, ww = c, h, w
    k_real, k_pad = c * h * w, _round_up(c * h * w, LANE)
    layers = []
    for (wt, bias) in params["conv"]:
        wt = np.asarray(wt, np.float32)
        bias = np.asarray(bias, np.float32)
        f = wt.shape[0]
        oh, ow = (hh - 1) // 2 + 1, (ww - 1) // 2 + 1          # 3x3, s2, p1
        n_real, n_pad = f * oh * ow, _round_up(f * oh * ow, LANE)
        t = np.zeros((k_pad, n_pad), np.float32)
        for r in range(oh):
            for s in range(ow):
                out_idx = np.arange(f) * (oh * ow) + r * ow + s
                for i in range(3):
                    for j in range(3):
                        ih, iw = 2 * r + i - 1, 2 * s + j - 1
                        if 0 <= ih < hh and 0 <= iw < ww:
                            in_idx = np.arange(cin) * (hh * ww) + ih * ww + iw
                            t[in_idx[:, None], out_idx[None, :]] = wt[:, :, i, j].T
        bp = np.zeros((1, n_pad), np.float32)
        bp[0, :n_real] = np.repeat(bias, oh * ow)
        layers.append((jnp.asarray(t, jnp.bfloat16), jnp.asarray(bp, jnp.float32)))
        cin, hh, ww = f, oh, ow
        k_real, k_pad = n_real, n_pad
    for (wt, bias) in params["fc"]:
        wt = np.asarray(wt, np.float32)
        bias = np.asarray(bias, np.float32)
        k, n = wt.shape
        assert k == k_real, "FC input dim must match flattened conv output"
        n_pad = _round_up(n, LANE)
        wpad = np.zeros((k_pad, n_pad), np.float32)
        wpad[:k, :n] = wt
        bp = np.zeros((1, n_pad), np.float32)
        bp[0, :n] = bias
        layers.append((jnp.asarray(wpad, jnp.bfloat16), jnp.asarray(bp, jnp.float32)))
        k_real, k_pad = n, n_pad
    return {"layers": layers}


def hard_update(params):
    # torch_utils.hardUpdate: target <- copy(model)
    return jax.tree_util.tree_map(lambda p: p, params)


def soft_update(target_params, params, tau):
    # torch_utils.softUpdate (updateTarget): Polyak averaging of the target net.
    return jax.tree_util.tree_map(lambda t, p: (1.0 - tau) * t + tau * p,
                                  target_params, params)


# --------------------------------------------------------------------------
# Pure-JAX float32 reference for validation (torch semantics).
# --------------------------------------------------------------------------
def ddqn_forward_ref(params, x):
    h = x
    for (w, b) in params["conv"]:
        h = jax.lax.conv_general_dilated(
            h, w, window_strides=(2, 2), padding=[(1, 1), (1, 1)],
            dimension_numbers=("NCHW", "OIHW", "NCHW"))
        h = jnp.maximum(h + b[None, :, None, None], 0.0)
    h = h.reshape(h.shape[0], -1)
    (w1, b1), (w2, b2) = params["fc"]
    h = jnp.maximum(h @ w1 + b1, 0.0)
    return h @ w2 + b2


if __name__ == "__main__":
    key = jax.random.PRNGKey(0)
    state_shape = (4, 16, 16)                   # (C, H, W) -> ConvDQN branch
    num_actions = 4
    conv_filters = [8, 16, 32, 64]
    fc_hidden = 32
    batch = 2

    key, kx, kp = jax.random.split(key, 3)
    x = jax.random.normal(kx, (batch,) + state_shape, jnp.float32)
    params = init_params(kp, state_shape, num_actions, conv_filters, fc_hidden)
    target_params = hard_update(params)

    packed = pack_params(params, state_shape)
    packed_t = pack_params(target_params, state_shape)

    q = jax.block_until_ready(ddqn_forward(packed, x, num_actions=num_actions))
    q_t = jax.block_until_ready(
        ddqn_target_forward(packed_t, x, num_actions=num_actions))
    q_ref = jax.block_until_ready(ddqn_forward_ref(params, x))

    assert q.shape == (batch, num_actions)
    # bf16 matmul operands -> compare with a scale-relative tolerance (~3%).
    q_ref_np = np.asarray(q_ref)
    tol = max(3e-2 * float(np.max(np.abs(q_ref_np))), 1e-5)
    np.testing.assert_allclose(np.asarray(q), q_ref_np, rtol=0.0, atol=tol)
    np.testing.assert_allclose(np.asarray(q_t), q_ref_np, rtol=0.0, atol=tol)
    print("KERNEL_OK")
</pallas_src>

<mosaic_0001>
module attributes {stable_mosaic.version = 11 : i64} {
  func.func @_ddqn_kernel(%arg0: i32, %arg1: memref<8x1024xbf16, #tpu.memory_space<vmem>>, %arg2: memref<1024x512xbf16, #tpu.memory_space<vmem>>, %arg3: memref<1x512xf32, #tpu.memory_space<vmem>>, %arg4: memref<512x256xbf16, #tpu.memory_space<vmem>>, %arg5: memref<1x256xf32, #tpu.memory_space<vmem>>, %arg6: memref<256x128xbf16, #tpu.memory_space<vmem>>, %arg7: memref<1x128xf32, #tpu.memory_space<vmem>>, %arg8: memref<128x128xbf16, #tpu.memory_space<vmem>>, %arg9: memref<1x128xf32, #tpu.memory_space<vmem>>, %arg10: memref<128x128xbf16, #tpu.memory_space<vmem>>, %arg11: memref<1x128xf32, #tpu.memory_space<vmem>>, %arg12: memref<128x128xbf16, #tpu.memory_space<vmem>>, %arg13: memref<1x128xf32, #tpu.memory_space<vmem>>, %arg14: memref<8x128xf32, #tpu.memory_space<vmem>>) attributes {dimension_semantics = [#tpu.dimension_semantics<parallel>], iteration_bounds = array<i64: 1>, scalar_prefetch = 0 : i64, scratch_operands = 0 : i64, tpu.core_type = #tpu.core_type<tc>, window_params = [{transform_indices = @transform_0, window_bounds = array<i64: 8, 1024>}, {pipeline_mode = #tpu.pipeline_mode<synchronous>, transform_indices = @transform_1, window_bounds = array<i64: 1024, 512>}, {pipeline_mode = #tpu.pipeline_mode<synchronous>, transform_indices = @transform_2, window_bounds = array<i64: 1, 512>}, {pipeline_mode = #tpu.pipeline_mode<synchronous>, transform_indices = @transform_3, window_bounds = array<i64: 512, 256>}, {pipeline_mode = #tpu.pipeline_mode<synchronous>, transform_indices = @transform_4, window_bounds = array<i64: 1, 256>}, {pipeline_mode = #tpu.pipeline_mode<synchronous>, transform_indices = @transform_5, window_bounds = array<i64: 256, 128>}, {pipeline_mode = #tpu.pipeline_mode<synchronous>, transform_indices = @transform_6, window_bounds = array<i64: 1, 128>}, {pipeline_mode = #tpu.pipeline_mode<synchronous>, transform_indices = @transform_7, window_bounds = array<i64: 128, 128>}, {pipeline_mode = #tpu.pipeline_mode<synchronous>, transform_indices = @transform_8, window_bounds = array<i64: 1, 128>}, {pipeline_mode = #tpu.pipeline_mode<synchronous>, transform_indices = @transform_9, window_bounds = array<i64: 128, 128>}, {pipeline_mode = #tpu.pipeline_mode<synchronous>, transform_indices = @transform_10, window_bounds = array<i64: 1, 128>}, {pipeline_mode = #tpu.pipeline_mode<synchronous>, transform_indices = @transform_11, window_bounds = array<i64: 128, 128>}, {pipeline_mode = #tpu.pipeline_mode<synchronous>, transform_indices = @transform_12, window_bounds = array<i64: 1, 128>}, {transform_indices = @transform_13, window_bounds = array<i64: 8, 128>}]} {
    %c0 = arith.constant 0 : index
    %c0_0 = arith.constant 0 : index
    %0 = vector.load %arg1[%c0, %c0_0] : memref<8x1024xbf16, #tpu.memory_space<vmem>>, vector<8x1024xbf16>
    %c0_1 = arith.constant 0 : index
    %c0_2 = arith.constant 0 : index
    %1 = vector.load %arg2[%c0_1, %c0_2] : memref<1024x512xbf16, #tpu.memory_space<vmem>>, vector<1024x512xbf16>
    %cst = arith.constant dense<0.000000e+00> : vector<8x512xf32>
    %2 = tpu.matmul %0, %1, %cst {dimension_numbers = #tpu.dot_dimension_numbers<[1], [0], [0], [1], [0, 0, 1, 1], [], []>} : vector<8x1024xbf16>, vector<1024x512xbf16>, vector<8x512xf32> -> vector<8x512xf32>
    %c0_3 = arith.constant 0 : index
    %c0_4 = arith.constant 0 : index
    %3 = vector.load %arg3[%c0_3, %c0_4] : memref<1x512xf32, #tpu.memory_space<vmem>>, vector<1x512xf32>
    %4 = vector.broadcast %3 : vector<1x512xf32> to vector<8x512xf32>
    %5 = arith.addf %2, %4 : vector<8x512xf32>
    %cst_5 = arith.constant 0.000000e+00 : f32
    %6 = vector.broadcast %cst_5 : f32 to vector<8x512xf32>
    %7 = arith.maximumf %5, %6 : vector<8x512xf32>
    %8 = arith.truncf %7 : vector<8x512xf32> to vector<8x512xbf16>
    %c0_6 = arith.constant 0 : index
    %c0_7 = arith.constant 0 : index
    %9 = vector.load %arg4[%c0_6, %c0_7] : memref<512x256xbf16, #tpu.memory_space<vmem>>, vector<512x256xbf16>
    %cst_8 = arith.constant dense<0.000000e+00> : vector<8x256xf32>
    %10 = tpu.matmul %8, %9, %cst_8 {dimension_numbers = #tpu.dot_dimension_numbers<[1], [0], [0], [1], [0, 0, 1, 1], [], []>} : vector<8x512xbf16>, vector<512x256xbf16>, vector<8x256xf32> -> vector<8x256xf32>
    %c0_9 = arith.constant 0 : index
    %c0_10 = arith.constant 0 : index
    %11 = vector.load %arg5[%c0_9, %c0_10] : memref<1x256xf32, #tpu.memory_space<vmem>>, vector<1x256xf32>
    %12 = vector.broadcast %11 : vector<1x256xf32> to vector<8x256xf32>
    %13 = arith.addf %10, %12 : vector<8x256xf32>
    %cst_11 = arith.constant 0.000000e+00 : f32
    %14 = vector.broadcast %cst_11 : f32 to vector<8x256xf32>
    %15 = arith.maximumf %13, %14 : vector<8x256xf32>
    %16 = arith.truncf %15 : vector<8x256xf32> to vector<8x256xbf16>
    %c0_12 = arith.constant 0 : index
    %c0_13 = arith.constant 0 : index
    %17 = vector.load %arg6[%c0_12, %c0_13] : memref<256x128xbf16, #tpu.memory_space<vmem>>, vector<256x128xbf16>
    %cst_14 = arith.constant dense<0.000000e+00> : vector<8x128xf32>
    %18 = tpu.matmul %16, %17, %cst_14 {dimension_numbers = #tpu.dot_dimension_numbers<[1], [0], [0], [1], [0, 0, 1, 1], [], []>} : vector<8x256xbf16>, vector<256x128xbf16>, vector<8x128xf32> -> vector<8x128xf32>
    %c0_15 = arith.constant 0 : index
    %c0_16 = arith.constant 0 : index
    %19 = vector.load %arg7[%c0_15, %c0_16] : memref<1x128xf32, #tpu.memory_space<vmem>>, vector<1x128xf32>
    %20 = vector.broadcast %19 : vector<1x128xf32> to vector<8x128xf32>
    %21 = arith.addf %18, %20 : vector<8x128xf32>
    %cst_17 = arith.constant 0.000000e+00 : f32
    %22 = vector.broadcast %cst_17 : f32 to vector<8x128xf32>
    %23 = arith.maximumf %21, %22 : vector<8x128xf32>
    %24 = arith.truncf %23 : vector<8x128xf32> to vector<8x128xbf16>
    %c0_18 = arith.constant 0 : index
    %c0_19 = arith.constant 0 : index
    %25 = vector.load %arg8[%c0_18, %c0_19] : memref<128x128xbf16, #tpu.memory_space<vmem>>, vector<128x128xbf16>
    %cst_20 = arith.constant dense<0.000000e+00> : vector<8x128xf32>
    %26 = tpu.matmul %24, %25, %cst_20 {dimension_numbers = #tpu.dot_dimension_numbers<[1], [0], [0], [1], [0, 0, 1, 1], [], []>} : vector<8x128xbf16>, vector<128x128xbf16>, vector<8x128xf32> -> vector<8x128xf32>
    %c0_21 = arith.constant 0 : index
    %c0_22 = arith.constant 0 : index
    %27 = vector.load %arg9[%c0_21, %c0_22] : memref<1x128xf32, #tpu.memory_space<vmem>>, vector<1x128xf32>
    %28 = vector.broadcast %27 : vector<1x128xf32> to vector<8x128xf32>
    %29 = arith.addf %26, %28 : vector<8x128xf32>
    %cst_23 = arith.constant 0.000000e+00 : f32
    %30 = vector.broadcast %cst_23 : f32 to vector<8x128xf32>
    %31 = arith.maximumf %29, %30 : vector<8x128xf32>
    %32 = arith.truncf %31 : vector<8x128xf32> to vector<8x128xbf16>
    %c0_24 = arith.constant 0 : index
    %c0_25 = arith.constant 0 : index
    %33 = vector.load %arg10[%c0_24, %c0_25] : memref<128x128xbf16, #tpu.memory_space<vmem>>, vector<128x128xbf16>
    %cst_26 = arith.constant dense<0.000000e+00> : vector<8x128xf32>
    %34 = tpu.matmul %32, %33, %cst_26 {dimension_numbers = #tpu.dot_dimension_numbers<[1], [0], [0], [1], [0, 0, 1, 1], [], []>} : vector<8x128xbf16>, vector<128x128xbf16>, vector<8x128xf32> -> vector<8x128xf32>
    %c0_27 = arith.constant 0 : index
    %c0_28 = arith.constant 0 : index
    %35 = vector.load %arg11[%c0_27, %c0_28] : memref<1x128xf32, #tpu.memory_space<vmem>>, vector<1x128xf32>
    %36 = vector.broadcast %35 : vector<1x128xf32> to vector<8x128xf32>
    %37 = arith.addf %34, %36 : vector<8x128xf32>
    %cst_29 = arith.constant 0.000000e+00 : f32
    %38 = vector.broadcast %cst_29 : f32 to vector<8x128xf32>
    %39 = arith.maximumf %37, %38 : vector<8x128xf32>
    %40 = arith.truncf %39 : vector<8x128xf32> to vector<8x128xbf16>
    %c0_30 = arith.constant 0 : index
    %c0_31 = arith.constant 0 : index
    %41 = vector.load %arg12[%c0_30, %c0_31] : memref<128x128xbf16, #tpu.memory_space<vmem>>, vector<128x128xbf16>
    %cst_32 = arith.constant dense<0.000000e+00> : vector<8x128xf32>
    %42 = tpu.matmul %40, %41, %cst_32 {dimension_numbers = #tpu.dot_dimension_numbers<[1], [0], [0], [1], [0, 0, 1, 1], [], []>} : vector<8x128xbf16>, vector<128x128xbf16>, vector<8x128xf32> -> vector<8x128xf32>
    %c0_33 = arith.constant 0 : index
    %c0_34 = arith.constant 0 : index
    %43 = vector.load %arg13[%c0_33, %c0_34] : memref<1x128xf32, #tpu.memory_space<vmem>>, vector<1x128xf32>
    %44 = vector.broadcast %43 : vector<1x128xf32> to vector<8x128xf32>
    %45 = arith.addf %42, %44 : vector<8x128xf32>
    %c0_35 = arith.constant 0 : index
    %c0_36 = arith.constant 0 : index
    %46 = vector.load %arg14[%c0_35, %c0_36] : memref<8x128xf32, #tpu.memory_space<vmem>>, vector<8x128xf32>
    tpu.vector_store %arg14[%c0_35, %c0_36], %45 {strides = array<i32>} : memref<8x128xf32, #tpu.memory_space<vmem>>, vector<8x128xf32>,
    return
  }
  func.func @transform_0(%arg0: i32) -> (i32, i32) {
    %c0_i32 = arith.constant 0 : i32
    %c0_i32_0 = arith.constant 0 : i32
    return %arg0, %c0_i32 : i32, i32
  }
  func.func @transform_1(%arg0: i32) -> (i32, i32) {
    %c0_i32 = arith.constant 0 : i32
    %c0_i32_0 = arith.constant 0 : i32
    %c0_i32_1 = arith.constant 0 : i32
    return %c0_i32, %c0_i32_0 : i32, i32
  }
  func.func @transform_2(%arg0: i32) -> (i32, i32) {
    %c0_i32 = arith.constant 0 : i32
    %c0_i32_0 = arith.constant 0 : i32
    %c0_i32_1 = arith.constant 0 : i32
    return %c0_i32, %c0_i32_0 : i32, i32
  }
  func.func @transform_3(%arg0: i32) -> (i32, i32) {
    %c0_i32 = arith.constant 0 : i32
    %c0_i32_0 = arith.constant 0 : i32
    %c0_i32_1 = arith.constant 0 : i32
    return %c0_i32, %c0_i32_0 : i32, i32
  }
  func.func @transform_4(%arg0: i32) -> (i32, i32) {
    %c0_i32 = arith.constant 0 : i32
    %c0_i32_0 = arith.constant 0 : i32
    %c0_i32_1 = arith.constant 0 : i32
    return %c0_i32, %c0_i32_0 : i32, i32
  }
  func.func @transform_5(%arg0: i32) -> (i32, i32) {
    %c0_i32 = arith.constant 0 : i32
    %c0_i32_0 = arith.constant 0 : i32
    %c0_i32_1 = arith.constant 0 : i32
    return %c0_i32, %c0_i32_0 : i32, i32
  }
  func.func @transform_6(%arg0: i32) -> (i32, i32) {
    %c0_i32 = arith.constant 0 : i32
    %c0_i32_0 = arith.constant 0 : i32
    %c0_i32_1 = arith.constant 0 : i32
    return %c0_i32, %c0_i32_0 : i32, i32
  }
  func.func @transform_7(%arg0: i32) -> (i32, i32) {
    %c0_i32 = arith.constant 0 : i32
    %c0_i32_0 = arith.constant 0 : i32
    %c0_i32_1 = arith.constant 0 : i32
    return %c0_i32, %c0_i32_0 : i32, i32
  }
  func.func @transform_8(%arg0: i32) -> (i32, i32) {
    %c0_i32 = arith.constant 0 : i32
    %c0_i32_0 = arith.constant 0 : i32
    %c0_i32_1 = arith.constant 0 : i32
    return %c0_i32, %c0_i32_0 : i32, i32
  }
  func.func @transform_9(%arg0: i32) -> (i32, i32) {
    %c0_i32 = arith.constant 0 : i32
    %c0_i32_0 = arith.constant 0 : i32
    %c0_i32_1 = arith.constant 0 : i32
    return %c0_i32, %c0_i32_0 : i32, i32
  }
  func.func @transform_10(%arg0: i32) -> (i32, i32) {
    %c0_i32 = arith.constant 0 : i32
    %c0_i32_0 = arith.constant 0 : i32
    %c0_i32_1 = arith.constant 0 : i32
    return %c0_i32, %c0_i32_0 : i32, i32
  }
  func.func @transform_11(%arg0: i32) -> (i32, i32) {
    %c0_i32 = arith.constant 0 : i32
    %c0_i32_0 = arith.constant 0 : i32
    %c0_i32_1 = arith.constant 0 : i32
    return %c0_i32, %c0_i32_0 : i32, i32
  }
  func.func @transform_12(%arg0: i32) -> (i32, i32) {
    %c0_i32 = arith.constant 0 : i32
    %c0_i32_0 = arith.constant 0 : i32
    %c0_i32_1 = arith.constant 0 : i32
    return %c0_i32, %c0_i32_0 : i32, i32
  }
  func.func @transform_13(%arg0: i32) -> (i32, i32) {
    %c0_i32 = arith.constant 0 : i32
    %c0_i32_0 = arith.constant 0 : i32
    return %arg0, %c0_i32 : i32, i32
  }
}

</mosaic_0001>

<llo_original>
// kernel: ddqn_forward.1
$region0: #{ddqn_forward.1}
  #allocation0 [shape = 'u32[]', space=smem, size = 0x4, offset = 0x4, fixed_abs, tag = 'smem constant byte address 0x4 - core index']
  #allocation1 [shape = 'u32[72,128]{1,0:T(1,128)}', space=vmem, size = 0x9000, scoped, tag = 'internal scratch']
  %s0 = inlined_call_operand.vmem [shape: bf16[8,1024], index: 0, kind: input, shape index: {}]
  %s1 = inlined_call_operand.hbm [shape: bf16[1024,512], index: 1, kind: input, shape index: {}]
  %s2 = inlined_call_operand.vmem [shape: f32[1,512], index: 2, kind: input, shape index: {}]
  %s3 = inlined_call_operand.hbm [shape: bf16[512,256], index: 3, kind: input, shape index: {}]
  %s4 = inlined_call_operand.vmem [shape: f32[1,256], index: 4, kind: input, shape index: {}]
  %s5 = inlined_call_operand.vmem [shape: bf16[256,128], index: 5, kind: input, shape index: {}]
  %s6 = inlined_call_operand.vmem [shape: f32[1,128], index: 6, kind: input, shape index: {}]
  %s7 = inlined_call_operand.vmem [shape: bf16[128,128], index: 7, kind: input, shape index: {}]
  %s8 = inlined_call_operand.vmem [shape: f32[1,128], index: 8, kind: input, shape index: {}]
  %s9 = inlined_call_operand.vmem [shape: bf16[128,128], index: 9, kind: input, shape index: {}]
  %s10 = inlined_call_operand.vmem [shape: f32[1,128], index: 10, kind: input, shape index: {}]
  %s11 = inlined_call_operand.hbm [shape: bf16[128,128], index: 11, kind: input, shape index: {}]
  %s12 = inlined_call_operand.vmem [shape: f32[1,128], index: 12, kind: input, shape index: {}]
  %s13 = inlined_call_operand.vmem [shape: f32[8,128], index: 13, kind: output, shape index: {}]
  %s14 = sld [smem:[#allocation0]]
  $region74: #{ddqn_forward.1} parent=0
    _
  %s16 = ssub.s32 1, %s14
  %s17 = scalar_select 0, %s16, %s14
  $region1: #{ddqn_forward.1} parent=0
    #allocation2 [shape = 'u8[1048576]{0}', space=vmem, size = 0x100000, scoped, tag = 'input window, operand 1, single buffered']
    #allocation3 [shape = 's32[1]{0}', space=sflag, size = 0x4, scoped, tag = 'scoped memory for ddqn_forward.1']
    #allocation4 [shape = 'u8[262144]{0}', space=vmem, size = 0x40000, scoped, tag = 'input window, operand 3, single buffered']
    #allocation5 [shape = 's32[1]{0}', space=sflag, size = 0x4, scoped, tag = 'scoped memory for ddqn_forward.1']
    #allocation6 [shape = 'u8[32768]{0}', space=vmem, size = 0x8000, scoped, tag = 'input window, operand 11, single buffered']
    %18 = vsyncpa [#allocation3], 0
    %19 = vsyncpa [#allocation5], 0
    // Predicated region
    $region2: #{ddqn_forward.1} parent=1 // pred_check
      _
    $region3: #{ddqn_forward.1} parent=1 // pred_check_branch
      %21 = sbr.rel (0) target = $region5
    $region4: #{ddqn_forward.1} parent=1 // pred_region
      _
    $region5: #{ddqn_forward.1} parent=1 // pred_fallthru
      _
    // Predicated region
    $region6: #{ddqn_forward.1} parent=1 // pred_check
      _
    $region7: #{ddqn_forward.1} parent=1 // pred_check_branch
      %23 = sbr.rel (0) target = $region9
    $region8: #{ddqn_forward.1} parent=1 // pred_region
      %25 = vsyncadd [#allocation3], 0
      %s26 = sshll.u32 %s1, 4
      %s27 = int_to_ptr.hbm [resolvable:$true] %s26
      %s28 = sshll.u32 [#allocation2], 4
      %s29 = int_to_ptr.vmem [resolvable:$true] %s28
      %34 = dma.hbm_to_vmem [thread:$0]  %s27, 32768, %s29, [#allocation3], 256, 256, 16
    $region9: #{ddqn_forward.1} parent=1 // pred_fallthru
      _
    // Predicated region
    $region10: #{ddqn_forward.1} parent=1 // pred_check
      _
    $region11: #{ddqn_forward.1} parent=1 // pred_check_branch
      %36 = sbr.rel (0) target = $region13
    $region12: #{ddqn_forward.1} parent=1 // pred_region
      _
    $region13: #{ddqn_forward.1} parent=1 // pred_fallthru
      _
    // Predicated region
    $region14: #{ddqn_forward.1} parent=1 // pred_check
      _
    $region15: #{ddqn_forward.1} parent=1 // pred_check_branch
      %38 = sbr.rel (0) target = $region17
    $region16: #{ddqn_forward.1} parent=1 // pred_region
      %40 = vsyncadd [#allocation5], 0
      %s41 = sshll.u32 %s3, 4
      %s42 = int_to_ptr.hbm [resolvable:$true] %s41
      %s43 = sshll.u32 [#allocation4], 4
      %s44 = int_to_ptr.vmem [resolvable:$true] %s43
      %49 = dma.hbm_to_vmem [thread:$0]  %s42, 8192, %s44, [#allocation5], 128, 128, 8
    $region17: #{ddqn_forward.1} parent=1 // pred_fallthru
      _
    // Predicated region
    $region18: #{ddqn_forward.1} parent=1 // pred_check
      _
    $region19: #{ddqn_forward.1} parent=1 // pred_check_branch
      %51 = sbr.rel (0) target = $region21
    $region20: #{ddqn_forward.1} parent=1 // pred_region
      _
    $region21: #{ddqn_forward.1} parent=1 // pred_fallthru
      _
    // Predicated region
    $region22: #{ddqn_forward.1} parent=1 // pred_check
      _
    $region23: #{ddqn_forward.1} parent=1 // pred_check_branch
      %53 = sbr.rel (0) target = $region25
    $region24: #{ddqn_forward.1} parent=1 // pred_region
      _
    $region25: #{ddqn_forward.1} parent=1 // pred_fallthru
      _
    // Predicated region
    $region26: #{ddqn_forward.1} parent=1 // pred_check
      _
    $region27: #{ddqn_forward.1} parent=1 // pred_check_branch
      %55 = sbr.rel (0) target = $region29
    $region28: #{ddqn_forward.1} parent=1 // pred_region
      _
    $region29: #{ddqn_forward.1} parent=1 // pred_fallthru
      _
    // Predicated region
    $region30: #{ddqn_forward.1} parent=1 // pred_check
      _
    $region31: #{ddqn_forward.1} parent=1 // pred_check_branch
      %57 = sbr.rel (0) target = $region33
    $region32: #{ddqn_forward.1} parent=1 // pred_region
      _
    $region33: #{ddqn_forward.1} parent=1 // pred_fallthru
      _
    // Predicated region
    $region34: #{ddqn_forward.1} parent=1 // pred_check
      _
    $region35: #{ddqn_forward.1} parent=1 // pred_check_branch
      %59 = sbr.rel (0) target = $region37
    $region36: #{ddqn_forward.1} parent=1 // pred_region
      _
    $region37: #{ddqn_forward.1} parent=1 // pred_fallthru
      _
    // Predicated region
    $region38: #{ddqn_forward.1} parent=1 // pred_check
      _
    $region39: #{ddqn_forward.1} parent=1 // pred_check_branch
      %61 = sbr.rel (0) target = $region41
    $region40: #{ddqn_forward.1} parent=1 // pred_region
      _
    $region41: #{ddqn_forward.1} parent=1 // pred_fallthru
      _
    // Predicated region
    $region42: #{ddqn_forward.1} parent=1 // pred_check
      _
    $region43: #{ddqn_forward.1} parent=1 // pred_check_branch
      %63 = sbr.rel (0) target = $region45
    $region44: #{ddqn_forward.1} parent=1 // pred_region
      _
    $region45: #{ddqn_forward.1} parent=1 // pred_fallthru
      _
    // Predicated region
    $region46: #{ddqn_forward.1} parent=1 // pred_check
      _
    $region47: #{ddqn_forward.1} parent=1 // pred_check_branch
      %65 = sbr.rel (0) target = $region49
    $region48: #{ddqn_forward.1} parent=1 // pred_region
      %67 = vsyncadd [#allocation5], 0
      %s68 = sshll.u32 %s11, 4
      %s69 = int_to_ptr.hbm [resolvable:$true] %s68
      %s70 = sshll.u32 [#allocation6], 4
      %s71 = int_to_ptr.vmem [resolvable:$true] %s70
      %76 = dma.hbm_to_vmem [thread:$0]  %s69, 1024, %s71, [#allocation5], 64, 64, 4
    $region49: #{ddqn_forward.1} parent=1 // pred_fallthru
      _
    // Predicated region
    $region50: #{ddqn_forward.1} parent=1 // pred_check
      _
    $region51: #{ddqn_forward.1} parent=1 // pred_check_branch
      %78 = sbr.rel (0) target = $region53
    $region52: #{ddqn_forward.1} parent=1 // pred_region
      _
    $region53: #{ddqn_forward.1} parent=1 // pred_fallthru
      _
    // Predicated region
    $region54: #{ddqn_forward.1} parent=1 // pred_check
      _
    $region55: #{ddqn_forward.1} parent=1 // pred_check_branch
      %80 = sbr.rel (0) target = $region57
    $region56: #{ddqn_forward.1} parent=1 // pred_region
      %82 = dma.done [#allocation3], 32768
    $region57: #{ddqn_forward.1} parent=1 // pred_fallthru
      _
    // Predicated region
    $region58: #{ddqn_forward.1} parent=1 // pred_check
      _
    $region59: #{ddqn_forward.1} parent=1 // pred_check_branch
      %84 = sbr.rel (0) target = $region61
    $region60: #{ddqn_forward.1} parent=1 // pred_region
      %86 = dma.done [#allocation5], 8192
    $region61: #{ddqn_forward.1} parent=1 // pred_fallthru
      _
    // Predicated region
    $region62: #{ddqn_forward.1} parent=1 // pred_check
      _
    $region63: #{ddqn_forward.1} parent=1 // pred_check_branch
      %88 = sbr.rel (0) target = $region65
    $region64: #{ddqn_forward.1} parent=1 // pred_region
      %90 = dma.done [#allocation5], 1024
    $region65: #{ddqn_forward.1} parent=1 // pred_fallthru
      _
    %v91 = vld [vmem:[%s0] sm:$0xff]
    %v92 = vld [vmem:[%s0 + $0x8] sm:$0xff]
    %v93 = vld [vmem:[%s0 + $0x10] sm:$0xff]
    %v94 = vld [vmem:[%s0 + $0x18] sm:$0xff]
    %v95 = vld [vmem:[#allocation2] sm:$0xff]
    %v96 = vld [vmem:[#allocation2 + $0x8] sm:$0xff]
    %v97 = vld [vmem:[#allocation2 + $0x10] sm:$0xff]
    %v98 = vld [vmem:[#allocation2 + $0x18] sm:$0xff]
    %v99 = vld [vmem:[#allocation2 + $0x20] sm:$0xff]
    %v100 = vld [vmem:[#allocation2 + $0x28] sm:$0xff]
    %v101 = vld [vmem:[#allocation2 + $0x30] sm:$0xff]
    %v102 = vld [vmem:[#allocation2 + $0x38] sm:$0xff]
    %v103 = vld [vmem:[#allocation2 + $0x40] sm:$0xff]
    %v104 = vld [vmem:[#allocation2 + $0x48] sm:$0xff]
    %v105 = vld [vmem:[#allocation2 + $0x50] sm:$0xff]
    %v106 = vld [vmem:[#allocation2 + $0x58] sm:$0xff]
    %v107 = vld [vmem:[#allocation2 + $0x60] sm:$0xff]
    %v108 = vld [vmem:[#allocation2 + $0x68] sm:$0xff]
    %v109 = vld [vmem:[#allocation2 + $0x70] sm:$0xff]
    %v110 = vld [vmem:[#allocation2 + $0x78] sm:$0xff]
    %v111 = vld [vmem:[#allocation2 + $0x80] sm:$0xff]
    %v112 = vld [vmem:[#allocation2 + $0x88] sm:$0xff]
    %v113 = vld [vmem:[#allocation2 + $0x90] sm:$0xff]
    %v114 = vld [vmem:[#allocation2 + $0x98] sm:$0xff]
    %v115 = vld [vmem:[#allocation2 + $0xa0] sm:$0xff]
    %v116 = vld [vmem:[#allocation2 + $0xa8] sm:$0xff]
    %v117 = vld [vmem:[#allocation2 + $0xb0] sm:$0xff]
    %v118 = vld [vmem:[#allocation2 + $0xb8] sm:$0xff]
    %v119 = vld [vmem:[#allocation2 + $0xc0] sm:$0xff]
    %v120 = vld [vmem:[#allocation2 + $0xc8] sm:$0xff]
    %v121 = vld [vmem:[#allocation2 + $0xd0] sm:$0xff]
    %v122 = vld [vmem:[#allocation2 + $0xd8] sm:$0xff]
    %v123 = vld [vmem:[#allocation2 + $0xe0] sm:$0xff]
    %v124 = vld [vmem:[#allocation2 + $0xe8] sm:$0xff]
    %v125 = vld [vmem:[#allocation2 + $0xf0] sm:$0xff]
    %v126 = vld [vmem:[#allocation2 + $0xf8] sm:$0xff]
    %v127 = vld [vmem:[#allocation2 + $0x100] sm:$0xff]
    %v128 = vld [vmem:[#allocation2 + $0x108] sm:$0xff]
    %v129 = vld [vmem:[#allocation2 + $0x110] sm:$0xff]
    %v130 = vld [vmem:[#allocation2 + $0x118] sm:$0xff]
    %v131 = vld [vmem:[#allocation2 + $0x120] sm:$0xff]
    %v132 = vld [vmem:[#allocation2 + $0x128] sm:$0xff]
    %v133 = vld [vmem:[#allocation2 + $0x130] sm:$0xff]
    %v134 = vld [vmem:[#allocation2 + $0x138] sm:$0xff]
    %v135 = vld [vmem:[#allocation2 + $0x140] sm:$0xff]
    %v136 = vld [vmem:[#allocation2 + $0x148] sm:$0xff]
    %v137 = vld [vmem:[#allocation2 + $0x150] sm:$0xff]
    %v138 = vld [vmem:[#allocation2 + $0x158] sm:$0xff]
    %v139 = vld [vmem:[#allocation2 + $0x160] sm:$0xff]
    %v140 = vld [vmem:[#allocation2 + $0x168] sm:$0xff]
    %v141 = vld [vmem:[#allocation2 + $0x170] sm:$0xff]
    %v142 = vld [vmem:[#allocation2 + $0x178] sm:$0xff]
    %v143 = vld [vmem:[#allocation2 + $0x180] sm:$0xff]
    %v144 = vld [vmem:[#allocation2 + $0x188] sm:$0xff]
    %v145 = vld [vmem:[#allocation2 + $0x190] sm:$0xff]
    %v146 = vld [vmem:[#allocation2 + $0x198] sm:$0xff]
    %v147 = vld [vmem:[#allocation2 + $0x1a0] sm:$0xff]
    %v148 = vld [vmem:[#allocation2 + $0x1a8] sm:$0xff]
    %v149 = vld [vmem:[#allocation2 + $0x1b0] sm:$0xff]
    %v150 = vld [vmem:[#allocation2 + $0x1b8] sm:$0xff]
    %v151 = vld [vmem:[#allocation2 + $0x1c0] sm:$0xff]
    %v152 = vld [vmem:[#allocation2 + $0x1c8] sm:$0xff]
    %v153 = vld [vmem:[#allocation2 + $0x1d0] sm:$0xff]
    %v154 = vld [vmem:[#allocation2 + $0x1d8] sm:$0xff]
    %v155 = vld [vmem:[#allocation2 + $0x1e0] sm:$0xff]
    %v156 = vld [vmem:[#allocation2 + $0x1e8] sm:$0xff]
    %v157 = vld [vmem:[#allocation2 + $0x1f0] sm:$0xff]
    %v158 = vld [vmem:[#allocation2 + $0x1f8] sm:$0xff]
    %v159 = vld [vmem:[#allocation2 + $0x200] sm:$0xff]
    %v160 = vld [vmem:[#allocation2 + $0x208] sm:$0xff]
    %v161 = vld [vmem:[#allocation2 + $0x210] sm:$0xff]
    %v162 = vld [vmem:[#allocation2 + $0x218] sm:$0xff]
    %v163 = vld [vmem:[#allocation2 + $0x220] sm:$0xff]
    %v164 = vld [vmem:[#allocation2 + $0x228] sm:$0xff]
    %v165 = vld [vmem:[#allocation2 + $0x230] sm:$0xff]
    %v166 = vld [vmem:[#allocation2 + $0x238] sm:$0xff]
    %v167 = vld [vmem:[#allocation2 + $0x240] sm:$0xff]
    %v168 = vld [vmem:[#allocation2 + $0x248] sm:$0xff]
    %v169 = vld [vmem:[#allocation2 + $0x250] sm:$0xff]
    %v170 = vld [vmem:[#allocation2 + $0x258] sm:$0xff]
    %v171 = vld [vmem:[#allocation2 + $0x260] sm:$0xff]
    %v172 = vld [vmem:[#allocation2 + $0x268] sm:$0xff]
    %v173 = vld [vmem:[#allocation2 + $0x270] sm:$0xff]
    %v174 = vld [vmem:[#allocation2 + $0x278] sm:$0xff]
    %v175 = vld [vmem:[#allocation2 + $0x280] sm:$0xff]
    %v176 = vld [vmem:[#allocation2 + $0x288] sm:$0xff]
    %v177 = vld [vmem:[#allocation2 + $0x290] sm:$0xff]
    %v178 = vld [vmem:[#allocation2 + $0x298] sm:$0xff]
    %v179 = vld [vmem:[#allocation2 + $0x2a0] sm:$0xff]
    %v180 = vld [vmem:[#allocation2 + $0x2a8] sm:$0xff]
    %v181 = vld [vmem:[#allocation2 + $0x2b0] sm:$0xff]
    %v182 = vld [vmem:[#allocation2 + $0x2b8] sm:$0xff]
    %v183 = vld [vmem:[#allocation2 + $0x2c0] sm:$0xff]
    %v184 = vld [vmem:[#allocation2 + $0x2c8] sm:$0xff]
    %v185 = vld [vmem:[#allocation2 + $0x2d0] sm:$0xff]
    %v186 = vld [vmem:[#allocation2 + $0x2d8] sm:$0xff]
    %v187 = vld [vmem:[#allocation2 + $0x2e0] sm:$0xff]
    %v188 = vld [vmem:[#allocation2 + $0x2e8] sm:$0xff]
    %v189 = vld [vmem:[#allocation2 + $0x2f0] sm:$0xff]
    %v190 = vld [vmem:[#allocation2 + $0x2f8] sm:$0xff]
    %v191 = vld [vmem:[#allocation2 + $0x300] sm:$0xff]
    %v192 = vld [vmem:[#allocation2 + $0x308] sm:$0xff]
    %v193 = vld [vmem:[#allocation2 + $0x310] sm:$0xff]
    %v194 = vld [vmem:[#allocation2 + $0x318] sm:$0xff]
    %v195 = vld [vmem:[#allocation2 + $0x320] sm:$0xff]
    %v196 = vld [vmem:[#allocation2 + $0x328] sm:$0xff]
    %v197 = vld [vmem:[#allocation2 + $0x330] sm:$0xff]
    %v198 = vld [vmem:[#allocation2 + $0x338] sm:$0xff]
    %v199 = vld [vmem:[#allocation2 + $0x340] sm:$0xff]
    %v200 = vld [vmem:[#allocation2 + $0x348] sm:$0xff]
    %v201 = vld [vmem:[#allocation2 + $0x350] sm:$0xff]
    %v202 = vld [vmem:[#allocation2 + $0x358] sm:$0xff]
    %v203 = vld [vmem:[#allocation2 + $0x360] sm:$0xff]
    %v204 = vld [vmem:[#allocation2 + $0x368] sm:$0xff]
    %v205 = vld [vmem:[#allocation2 + $0x370] sm:$0xff]
    %v206 = vld [vmem:[#allocation2 + $0x378] sm:$0xff]
    %v207 = vld [vmem:[#allocation2 + $0x380] sm:$0xff]
    %v208 = vld [vmem:[#allocation2 + $0x388] sm:$0xff]
    %v209 = vld [vmem:[#allocation2 + $0x390] sm:$0xff]
    %v210 = vld [vmem:[#allocation2 + $0x398] sm:$0xff]
    %v211 = vld [vmem:[#allocation2 + $0x3a0] sm:$0xff]
    %v212 = vld [vmem:[#allocation2 + $0x3a8] sm:$0xff]
    %v213 = vld [vmem:[#allocation2 + $0x3b0] sm:$0xff]
    %v214 = vld [vmem:[#allocation2 + $0x3b8] sm:$0xff]
    %v215 = vld [vmem:[#allocation2 + $0x3c0] sm:$0xff]
    %v216 = vld [vmem:[#allocation2 + $0x3c8] sm:$0xff]
    %v217 = vld [vmem:[#allocation2 + $0x3d0] sm:$0xff]
    %v218 = vld [vmem:[#allocation2 + $0x3d8] sm:$0xff]
    %v219 = vld [vmem:[#allocation2 + $0x3e0] sm:$0xff]
    %v220 = vld [vmem:[#allocation2 + $0x3e8] sm:$0xff]
    %v221 = vld [vmem:[#allocation2 + $0x3f0] sm:$0xff]
    %v222 = vld [vmem:[#allocation2 + $0x3f8] sm:$0xff]
    %v223 = vld [vmem:[#allocation2 + $0x400] sm:$0xff]
    %v224 = vld [vmem:[#allocation2 + $0x408] sm:$0xff]
    %v225 = vld [vmem:[#allocation2 + $0x410] sm:$0xff]
    %v226 = vld [vmem:[#allocation2 + $0x418] sm:$0xff]
    %v227 = vld [vmem:[#allocation2 + $0x420] sm:$0xff]
    %v228 = vld [vmem:[#allocation2 + $0x428] sm:$0xff]
    %v229 = vld [vmem:[#allocation2 + $0x430] sm:$0xff]
    %v230 = vld [vmem:[#allocation2 + $0x438] sm:$0xff]
    %v231 = vld [vmem:[#allocation2 + $0x440] sm:$0xff]
    %v232 = vld [vmem:[#allocation2 + $0x448] sm:$0xff]
    %v233 = vld [vmem:[#allocation2 + $0x450] sm:$0xff]
    %v234 = vld [vmem:[#allocation2 + $0x458] sm:$0xff]
    %v235 = vld [vmem:[#allocation2 + $0x460] sm:$0xff]
    %v236 = vld [vmem:[#allocation2 + $0x468] sm:$0xff]
    %v237 = vld [vmem:[#allocation2 + $0x470] sm:$0xff]
    %v238 = vld [vmem:[#allocation2 + $0x478] sm:$0xff]
    %v239 = vld [vmem:[#allocation2 + $0x480] sm:$0xff]
    %v240 = vld [vmem:[#allocation2 + $0x488] sm:$0xff]
    %v241 = vld [vmem:[#allocation2 + $0x490] sm:$0xff]
    %v242 = vld [vmem:[#allocation2 + $0x498] sm:$0xff]
    %v243 = vld [vmem:[#allocation2 + $0x4a0] sm:$0xff]
    %v244 = vld [vmem:[#allocation2 + $0x4a8] sm:$0xff]
    %v245 = vld [vmem:[#allocation2 + $0x4b0] sm:$0xff]
    %v246 = vld [vmem:[#allocation2 + $0x4b8] sm:$0xff]
    %v247 = vld [vmem:[#allocation2 + $0x4c0] sm:$0xff]
    %v248 = vld [vmem:[#allocation2 + $0x4c8] sm:$0xff]
    %v249 = vld [vmem:[#allocation2 + $0x4d0] sm:$0xff]
    %v250 = vld [vmem:[#allocation2 + $0x4d8] sm:$0xff]
    %v251 = vld [vmem:[#allocation2 + $0x4e0] sm:$0xff]
    %v252 = vld [vmem:[#allocation2 + $0x4e8] sm:$0xff]
    %v253 = vld [vmem:[#allocation2 + $0x4f0] sm:$0xff]
    %v254 = vld [vmem:[#allocation2 + $0x4f8] sm:$0xff]
    %v255 = vld [vmem:[#allocation2 + $0x500] sm:$0xff]
    %v256 = vld [vmem:[#allocation2 + $0x508] sm:$0xff]
    %v257 = vld [vmem:[#allocation2 + $0x510] sm:$0xff]
    %v258 = vld [vmem:[#allocation2 + $0x518] sm:$0xff]
    %v259 = vld [vmem:[#allocation2 + $0x520] sm:$0xff]
    %v260 = vld [vmem:[#allocation2 + $0x528] sm:$0xff]
    %v261 = vld [vmem:[#allocation2 + $0x530] sm:$0xff]
    %v262 = vld [vmem:[#allocation2 + $0x538] sm:$0xff]
    %v263 = vld [vmem:[#allocation2 + $0x540] sm:$0xff]
    %v264 = vld [vmem:[#allocation2 + $0x548] sm:$0xff]
    %v265 = vld [vmem:[#allocation2 + $0x550] sm:$0xff]
    %v266 = vld [vmem:[#allocation2 + $0x558] sm:$0xff]
    %v267 = vld [vmem:[#allocation2 + $0x560] sm:$0xff]
    %v268 = vld [vmem:[#allocation2 + $0x568] sm:$0xff]
    %v269 = vld [vmem:[#allocation2 + $0x570] sm:$0xff]
    %v270 = vld [vmem:[#allocation2 + $0x578] sm:$0xff]
    %v271 = vld [vmem:[#allocation2 + $0x580] sm:$0xff]
    %v272 = vld [vmem:[#allocation2 + $0x588] sm:$0xff]
    %v273 = vld [vmem:[#allocation2 + $0x590] sm:$0xff]
    %v274 = vld [vmem:[#allocation2 + $0x598] sm:$0xff]
    %v275 = vld [vmem:[#allocation2 + $0x5a0] sm:$0xff]
    %v276 = vld [vmem:[#allocation2 + $0x5a8] sm:$0xff]
    %v277 = vld [vmem:[#allocation2 + $0x5b0] sm:$0xff]
    %v278 = vld [vmem:[#allocation2 + $0x5b8] sm:$0xff]
    %v279 = vld [vmem:[#allocation2 + $0x5c0] sm:$0xff]
    %v280 = vld [vmem:[#allocation2 + $0x5c8] sm:$0xff]
    %v281 = vld [vmem:[#allocation2 + $0x5d0] sm:$0xff]
    %v282 = vld [vmem:[#allocation2 + $0x5d8] sm:$0xff]
    %v283 = vld [vmem:[#allocation2 + $0x5e0] sm:$0xff]
    %v284 = vld [vmem:[#allocation2 + $0x5e8] sm:$0xff]
    %v285 = vld [vmem:[#allocation2 + $0x5f0] sm:$0xff]
    %v286 = vld [vmem:[#allocation2 + $0x5f8] sm:$0xff]
    %v287 = vld [vmem:[#allocation2 + $0x600] sm:$0xff]
    %v288 = vld [vmem:[#allocation2 + $0x608] sm:$0xff]
    %v289 = vld [vmem:[#allocation2 + $0x610] sm:$0xff]
    %v290 = vld [vmem:[#allocation2 + $0x618] sm:$0xff]
    %v291 = vld [vmem:[#allocation2 + $0x620] sm:$0xff]
    %v292 = vld [vmem:[#allocation2 + $0x628] sm:$0xff]
    %v293 = vld [vmem:[#allocation2 + $0x630] sm:$0xff]
    %v294 = vld [vmem:[#allocation2 + $0x638] sm:$0xff]
    %v295 = vld [vmem:[#allocation2 + $0x640] sm:$0xff]
    %v296 = vld [vmem:[#allocation2 + $0x648] sm:$0xff]
    %v297 = vld [vmem:[#allocation2 + $0x650] sm:$0xff]
    %v298 = vld [vmem:[#allocation2 + $0x658] sm:$0xff]
    %v299 = vld [vmem:[#allocation2 + $0x660] sm:$0xff]
    %v300 = vld [vmem:[#allocation2 + $0x668] sm:$0xff]
    %v301 = vld [vmem:[#allocation2 + $0x670] sm:$0xff]
    %v302 = vld [vmem:[#allocation2 + $0x678] sm:$0xff]
    %v303 = vld [vmem:[#allocation2 + $0x680] sm:$0xff]
    %v304 = vld [vmem:[#allocation2 + $0x688] sm:$0xff]
    %v305 = vld [vmem:[#allocation2 + $0x690] sm:$0xff]
    %v306 = vld [vmem:[#allocation2 + $0x698] sm:$0xff]
    %v307 = vld [vmem:[#allocation2 + $0x6a0] sm:$0xff]
    %v308 = vld [vmem:[#allocation2 + $0x6a8] sm:$0xff]
    %v309 = vld [vmem:[#allocation2 + $0x6b0] sm:$0xff]
    %v310 = vld [vmem:[#allocation2 + $0x6b8] sm:$0xff]
    %v311 = vld [vmem:[#allocation2 + $0x6c0] sm:$0xff]
    %v312 = vld [vmem:[#allocation2 + $0x6c8] sm:$0xff]
    %v313 = vld [vmem:[#allocation2 + $0x6d0] sm:$0xff]
    %v314 = vld [vmem:[#allocation2 + $0x6d8] sm:$0xff]
    %v315 = vld [vmem:[#allocation2 + $0x6e0] sm:$0xff]
    %v316 = vld [vmem:[#allocation2 + $0x6e8] sm:$0xff]
    %v317 = vld [vmem:[#allocation2 + $0x6f0] sm:$0xff]
    %v318 = vld [vmem:[#allocation2 + $0x6f8] sm:$0xff]
    %v319 = vld [vmem:[#allocation2 + $0x700] sm:$0xff]
    %v320 = vld [vmem:[#allocation2 + $0x708] sm:$0xff]
    %v321 = vld [vmem:[#allocation2 + $0x710] sm:$0xff]
    %v322 = vld [vmem:[#allocation2 + $0x718] sm:$0xff]
    %v323 = vld [vmem:[#allocation2 + $0x720] sm:$0xff]
    %v324 = vld [vmem:[#allocation2 + $0x728] sm:$0xff]
    %v325 = vld [vmem:[#allocation2 + $0x730] sm:$0xff]
    %v326 = vld [vmem:[#allocation2 + $0x738] sm:$0xff]
    %v327 = vld [vmem:[#allocation2 + $0x740] sm:$0xff]
    %v328 = vld [vmem:[#allocation2 + $0x748] sm:$0xff]
    %v329 = vld [vmem:[#allocation2 + $0x750] sm:$0xff]
    %v330 = vld [vmem:[#allocation2 + $0x758] sm:$0xff]
    %v331 = vld [vmem:[#allocation2 + $0x760] sm:$0xff]
    %v332 = vld [vmem:[#allocation2 + $0x768] sm:$0xff]
    %v333 = vld [vmem:[#allocation2 + $0x770] sm:$0xff]
    %v334 = vld [vmem:[#allocation2 + $0x778] sm:$0xff]
    %v335 = vld [vmem:[#allocation2 + $0x780] sm:$0xff]
    %v336 = vld [vmem:[#allocation2 + $0x788] sm:$0xff]
    %v337 = vld [vmem:[#allocation2 + $0x790] sm:$0xff]
    %v338 = vld [vmem:[#allocation2 + $0x798] sm:$0xff]
    %v339 = vld [vmem:[#allocation2 + $0x7a0] sm:$0xff]
    %v340 = vld [vmem:[#allocation2 + $0x7a8] sm:$0xff]
    %v341 = vld [vmem:[#allocation2 + $0x7b0] sm:$0xff]
    %v342 = vld [vmem:[#allocation2 + $0x7b8] sm:$0xff]
    %v343 = vld [vmem:[#allocation2 + $0x7c0] sm:$0xff]
    %v344 = vld [vmem:[#allocation2 + $0x7c8] sm:$0xff]
    %v345 = vld [vmem:[#allocation2 + $0x7d0] sm:$0xff]
    %v346 = vld [vmem:[#allocation2 + $0x7d8] sm:$0xff]
    %v347 = vld [vmem:[#allocation2 + $0x7e0] sm:$0xff]
    %v348 = vld [vmem:[#allocation2 + $0x7e8] sm:$0xff]
    %v349 = vld [vmem:[#allocation2 + $0x7f0] sm:$0xff]
    %v350 = vld [vmem:[#allocation2 + $0x7f8] sm:$0xff]
    %v351 = vld [vmem:[%s2] sm:$0xf]
    %v353 = vperm.slane %v351, 0
    %v354 = vperm.slane %v351, 1
    %v355 = vperm.slane %v351, 2
    %v356 = vperm.slane %v351, 3
    %v365 = vunpack.c.l.b16 %v91
    %v366 = vunpack.c.h.b16 %v91
    %v367 = vunpack.c.l.b16 %v92
    %v368 = vunpack.c.h.b16 %v92
    %v369 = vunpack.c.l.b16 %v93
    %v370 = vunpack.c.h.b16 %v93
    %v371 = vunpack.c.l.b16 %v94
    %v372 = vunpack.c.h.b16 %v94
    %v373 = vpack.c.b16 %v365, %v365
    %v374 = vpack.c.b16 %v366, %v366
    %v375 = vpack.c.b16 %v367, %v367
    %v376 = vpack.c.b16 %v368, %v368
    %v377 = vpack.c.b16 %v369, %v369
    %v378 = vpack.c.b16 %v370, %v370
    %v379 = vpack.c.b16 %v371, %v371
    %v380 = vpack.c.b16 %v372, %v372
    %v645 = vunpack.c.l.b16 %v95
    %v646 = vunpack.c.h.b16 %v95
    %v647 = vunpack.c.l.b16 %v96
    %v648 = vunpack.c.h.b16 %v96
    %v649 = vunpack.c.l.b16 %v97
    %v650 = vunpack.c.h.b16 %v97
    %v651 = vunpack.c.l.b16 %v98
    %v652 = vunpack.c.h.b16 %v98
    %v653 = vunpack.c.l.b16 %v99
    %v654 = vunpack.c.h.b16 %v99
    %v655 = vunpack.c.l.b16 %v100
    %v656 = vunpack.c.h.b16 %v100
    %v657 = vunpack.c.l.b16 %v101
    %v658 = vunpack.c.h.b16 %v101
    %v659 = vunpack.c.l.b16 %v102
    %v660 = vunpack.c.h.b16 %v102
    %v661 = vunpack.c.l.b16 %v103
    %v662 = vunpack.c.h.b16 %v103
    %v663 = vunpack.c.l.b16 %v104
    %v664 = vunpack.c.h.b16 %v104
    %v665 = vunpack.c.l.b16 %v105
    %v666 = vunpack.c.h.b16 %v105
    %v667 = vunpack.c.l.b16 %v106
    %v668 = vunpack.c.h.b16 %v106
    %v669 = vunpack.c.l.b16 %v107
    %v670 = vunpack.c.h.b16 %v107
    %v671 = vunpack.c.l.b16 %v108
    %v672 = vunpack.c.h.b16 %v108
    %v673 = vunpack.c.l.b16 %v109
    %v674 = vunpack.c.h.b16 %v109
    %v675 = vunpack.c.l.b16 %v110
    %v676 = vunpack.c.h.b16 %v110
    %v677 = vunpack.c.l.b16 %v111
    %v678 = vunpack.c.h.b16 %v111
    %v679 = vunpack.c.l.b16 %v112
    %v680 = vunpack.c.h.b16 %v112
    %v681 = vunpack.c.l.b16 %v113
    %v682 = vunpack.c.h.b16 %v113
    %v683 = vunpack.c.l.b16 %v114
    %v684 = vunpack.c.h.b16 %v114
    %v685 = vunpack.c.l.b16 %v115
    %v686 = vunpack.c.h.b16 %v115
    %v687 = vunpack.c.l.b16 %v116
    %v688 = vunpack.c.h.b16 %v116
    %v689 = vunpack.c.l.b16 %v117
    %v690 = vunpack.c.h.b16 %v117
    %v691 = vunpack.c.l.b16 %v118
    %v692 = vunpack.c.h.b16 %v118
    %v693 = vunpack.c.l.b16 %v119
    %v694 = vunpack.c.h.b16 %v119
    %v695 = vunpack.c.l.b16 %v120
    %v696 = vunpack.c.h.b16 %v120
    %v697 = vunpack.c.l.b16 %v121
    %v698 = vunpack.c.h.b16 %v121
    %v699 = vunpack.c.l.b16 %v122
    %v700 = vunpack.c.h.b16 %v122
    %v701 = vunpack.c.l.b16 %v123
    %v702 = vunpack.c.h.b16 %v123
    %v703 = vunpack.c.l.b16 %v124
    %v704 = vunpack.c.h.b16 %v124
    %v705 = vunpack.c.l.b16 %v125
    %v706 = vunpack.c.h.b16 %v125
    %v707 = vunpack.c.l.b16 %v126
    %v708 = vunpack.c.h.b16 %v126
    %v709 = vunpack.c.l.b16 %v127
    %v710 = vunpack.c.h.b16 %v127
    %v711 = vunpack.c.l.b16 %v128
    %v712 = vunpack.c.h.b16 %v128
    %v713 = vunpack.c.l.b16 %v129
    %v714 = vunpack.c.h.b16 %v129
    %v715 = vunpack.c.l.b16 %v130
    %v716 = vunpack.c.h.b16 %v130
    %v717 = vunpack.c.l.b16 %v131
    %v718 = vunpack.c.h.b16 %v131
    %v719 = vunpack.c.l.b16 %v132
    %v720 = vunpack.c.h.b16 %v132
    %v721 = vunpack.c.l.b16 %v133
    %v722 = vunpack.c.h.b16 %v133
    %v723 = vunpack.c.l.b16 %v134
    %v724 = vunpack.c.h.b16 %v134
    %v725 = vunpack.c.l.b16 %v135
    %v726 = vunpack.c.h.b16 %v135
    %v727 = vunpack.c.l.b16 %v136
    %v728 = vunpack.c.h.b16 %v136
    %v729 = vunpack.c.l.b16 %v137
    %v730 = vunpack.c.h.b16 %v137
    %v731 = vunpack.c.l.b16 %v138
    %v732 = vunpack.c.h.b16 %v138
    %v733 = vunpack.c.l.b16 %v139
    %v734 = vunpack.c.h.b16 %v139
    %v735 = vunpack.c.l.b16 %v140
    %v736 = vunpack.c.h.b16 %v140
    %v737 = vunpack.c.l.b16 %v141
    %v738 = vunpack.c.h.b16 %v141
    %v739 = vunpack.c.l.b16 %v142
    %v740 = vunpack.c.h.b16 %v142
    %v741 = vunpack.c.l.b16 %v143
    %v742 = vunpack.c.h.b16 %v143
    %v743 = vunpack.c.l.b16 %v144
    %v744 = vunpack.c.h.b16 %v144
    %v745 = vunpack.c.l.b16 %v145
    %v746 = vunpack.c.h.b16 %v145
    %v747 = vunpack.c.l.b16 %v146
    %v748 = vunpack.c.h.b16 %v146
    %v749 = vunpack.c.l.b16 %v147
    %v750 = vunpack.c.h.b16 %v147
    %v751 = vunpack.c.l.b16 %v148
    %v752 = vunpack.c.h.b16 %v148
    %v753 = vunpack.c.l.b16 %v149
    %v754 = vunpack.c.h.b16 %v149
    %v755 = vunpack.c.l.b16 %v150
    %v756 = vunpack.c.h.b16 %v150
    %v757 = vunpack.c.l.b16 %v151
    %v758 = vunpack.c.h.b16 %v151
    %v759 = vunpack.c.l.b16 %v152
    %v760 = vunpack.c.h.b16 %v152
    %v761 = vunpack.c.l.b16 %v153
    %v762 = vunpack.c.h.b16 %v153
    %v763 = vunpack.c.l.b16 %v154
    %v764 = vunpack.c.h.b16 %v154
    %v765 = vunpack.c.l.b16 %v155
    %v766 = vunpack.c.h.b16 %v155
    %v767 = vunpack.c.l.b16 %v156
    %v768 = vunpack.c.h.b16 %v156
    %v769 = vunpack.c.l.b16 %v157
    %v770 = vunpack.c.h.b16 %v157
    %v771 = vunpack.c.l.b16 %v158
    %v772 = vunpack.c.h.b16 %v158
    %v773 = vunpack.c.l.b16 %v159
    %v774 = vunpack.c.h.b16 %v159
    %v775 = vunpack.c.l.b16 %v160
    %v776 = vunpack.c.h.b16 %v160
    %v777 = vunpack.c.l.b16 %v161
    %v778 = vunpack.c.h.b16 %v161
    %v779 = vunpack.c.l.b16 %v162
    %v780 = vunpack.c.h.b16 %v162
    %v781 = vunpack.c.l.b16 %v163
    %v782 = vunpack.c.h.b16 %v163
    %v783 = vunpack.c.l.b16 %v164
    %v784 = vunpack.c.h.b16 %v164
    %v785 = vunpack.c.l.b16 %v165
    %v786 = vunpack.c.h.b16 %v165
    %v787 = vunpack.c.l.b16 %v166
    %v788 = vunpack.c.h.b16 %v166
    %v789 = vunpack.c.l.b16 %v167
    %v790 = vunpack.c.h.b16 %v167
    %v791 = vunpack.c.l.b16 %v168
    %v792 = vunpack.c.h.b16 %v168
    %v793 = vunpack.c.l.b16 %v169
    %v794 = vunpack.c.h.b16 %v169
    %v795 = vunpack.c.l.b16 %v170
    %v796 = vunpack.c.h.b16 %v170
    %v797 = vunpack.c.l.b16 %v171
    %v798 = vunpack.c.h.b16 %v171
    %v799 = vunpack.c.l.b16 %v172
    %v800 = vunpack.c.h.b16 %v172
    %v801 = vunpack.c.l.b16 %v173
    %v802 = vunpack.c.h.b16 %v173
    %v803 = vunpack.c.l.b16 %v174
    %v804 = vunpack.c.h.b16 %v174
    %v805 = vunpack.c.l.b16 %v175
    %v806 = vunpack.c.h.b16 %v175
    %v807 = vunpack.c.l.b16 %v176
    %v808 = vunpack.c.h.b16 %v176
    %v809 = vunpack.c.l.b16 %v177
    %v810 = vunpack.c.h.b16 %v177
    %v811 = vunpack.c.l.b16 %v178
    %v812 = vunpack.c.h.b16 %v178
    %v813 = vunpack.c.l.b16 %v179
    %v814 = vunpack.c.h.b16 %v179
    %v815 = vunpack.c.l.b16 %v180
    %v816 = vunpack.c.h.b16 %v180
    %v817 = vunpack.c.l.b16 %v181
    %v818 = vunpack.c.h.b16 %v181
    %v819 = vunpack.c.l.b16 %v182
    %v820 = vunpack.c.h.b16 %v182
    %v821 = vunpack.c.l.b16 %v183
    %v822 = vunpack.c.h.b16 %v183
    %v823 = vunpack.c.l.b16 %v184
    %v824 = vunpack.c.h.b16 %v184
    %v825 = vunpack.c.l.b16 %v185
    %v826 = vunpack.c.h.b16 %v185
    %v827 = vunpack.c.l.b16 %v186
    %v828 = vunpack.c.h.b16 %v186
    %v829 = vunpack.c.l.b16 %v187
    %v830 = vunpack.c.h.b16 %v187
    %v831 = vunpack.c.l.b16 %v188
    %v832 = vunpack.c.h.b16 %v188
    %v833 = vunpack.c.l.b16 %v189
    %v834 = vunpack.c.h.b16 %v189
    %v835 = vunpack.c.l.b16 %v190
    %v836 = vunpack.c.h.b16 %v190
    %v837 = vunpack.c.l.b16 %v191
    %v838 = vunpack.c.h.b16 %v191
    %v839 = vunpack.c.l.b16 %v192
    %v840 = vunpack.c.h.b16 %v192
    %v841 = vunpack.c.l.b16 %v193
    %v842 = vunpack.c.h.b16 %v193
    %v843 = vunpack.c.l.b16 %v194
    %v844 = vunpack.c.h.b16 %v194
    %v845 = vunpack.c.l.b16 %v195
    %v846 = vunpack.c.h.b16 %v195
    %v847 = vunpack.c.l.b16 %v196
    %v848 = vunpack.c.h.b16 %v196
    %v849 = vunpack.c.l.b16 %v197
    %v850 = vunpack.c.h.b16 %v197
    %v851 = vunpack.c.l.b16 %v198
    %v852 = vunpack.c.h.b16 %v198
    %v853 = vunpack.c.l.b16 %v199
    %v854 = vunpack.c.h.b16 %v199
    %v855 = vunpack.c.l.b16 %v200
    %v856 = vunpack.c.h.b16 %v200
    %v857 = vunpack.c.l.b16 %v201
    %v858 = vunpack.c.h.b16 %v201
    %v859 = vunpack.c.l.b16 %v202
    %v860 = vunpack.c.h.b16 %v202
    %v861 = vunpack.c.l.b16 %v203
    %v862 = vunpack.c.h.b16 %v203
    %v863 = vunpack.c.l.b16 %v204
    %v864 = vunpack.c.h.b16 %v204
    %v865 = vunpack.c.l.b16 %v205
    %v866 = vunpack.c.h.b16 %v205
    %v867 = vunpack.c.l.b16 %v206
    %v868 = vunpack.c.h.b16 %v206
    %v869 = vunpack.c.l.b16 %v207
    %v870 = vunpack.c.h.b16 %v207
    %v871 = vunpack.c.l.b16 %v208
    %v872 = vunpack.c.h.b16 %v208
    %v873 = vunpack.c.l.b16 %v209
    %v874 = vunpack.c.h.b16 %v209
    %v875 = vunpack.c.l.b16 %v210
    %v876 = vunpack.c.h.b16 %v210
    %v877 = vunpack.c.l.b16 %v211
    %v878 = vunpack.c.h.b16 %v211
    %v879 = vunpack.c.l.b16 %v212
    %v880 = vunpack.c.h.b16 %v212
    %v881 = vunpack.c.l.b16 %v213
    %v882 = vunpack.c.h.b16 %v213
    %v883 = vunpack.c.l.b16 %v214
    %v884 = vunpack.c.h.b16 %v214
    %v885 = vunpack.c.l.b16 %v215
    %v886 = vunpack.c.h.b16 %v215
    %v887 = vunpack.c.l.b16 %v216
    %v888 = vunpack.c.h.b16 %v216
    %v889 = vunpack.c.l.b16 %v217
    %v890 = vunpack.c.h.b16 %v217
    %v891 = vunpack.c.l.b16 %v218
    %v892 = vunpack.c.h.b16 %v218
    %v893 = vunpack.c.l.b16 %v219
    %v894 = vunpack.c.h.b16 %v219
    %v895 = vunpack.c.l.b16 %v220
    %v896 = vunpack.c.h.b16 %v220
    %v897 = vunpack.c.l.b16 %v221
    %v898 = vunpack.c.h.b16 %v221
    %v899 = vunpack.c.l.b16 %v222
    %v900 = vunpack.c.h.b16 %v222
    %v901 = vunpack.c.l.b16 %v223
    %v902 = vunpack.c.h.b16 %v223
    %v903 = vunpack.c.l.b16 %v224
    %v904 = vunpack.c.h.b16 %v224
    %v905 = vunpack.c.l.b16 %v225
    %v906 = vunpack.c.h.b16 %v225
    %v907 = vunpack.c.l.b16 %v226
    %v908 = vunpack.c.h.b16 %v226
    %v909 = vunpack.c.l.b16 %v227
    %v910 = vunpack.c.h.b16 %v227
    %v911 = vunpack.c.l.b16 %v228
    %v912 = vunpack.c.h.b16 %v228
    %v913 = vunpack.c.l.b16 %v229
    %v914 = vunpack.c.h.b16 %v229
    %v915 = vunpack.c.l.b16 %v230
    %v916 = vunpack.c.h.b16 %v230
    %v917 = vunpack.c.l.b16 %v231
    %v918 = vunpack.c.h.b16 %v231
    %v919 = vunpack.c.l.b16 %v232
    %v920 = vunpack.c.h.b16 %v232
    %v921 = vunpack.c.l.b16 %v233
    %v922 = vunpack.c.h.b16 %v233
    %v923 = vunpack.c.l.b16 %v234
    %v924 = vunpack.c.h.b16 %v234
    %v925 = vunpack.c.l.b16 %v235
    %v926 = vunpack.c.h.b16 %v235
    %v927 = vunpack.c.l.b16 %v236
    %v928 = vunpack.c.h.b16 %v236
    %v929 = vunpack.c.l.b16 %v237
    %v930 = vunpack.c.h.b16 %v237
    %v931 = vunpack.c.l.b16 %v238
    %v932 = vunpack.c.h.b16 %v238
    %v933 = vunpack.c.l.b16 %v239
    %v934 = vunpack.c.h.b16 %v239
    %v935 = vunpack.c.l.b16 %v240
    %v936 = vunpack.c.h.b16 %v240
    %v937 = vunpack.c.l.b16 %v241
    %v938 = vunpack.c.h.b16 %v241
    %v939 = vunpack.c.l.b16 %v242
    %v940 = vunpack.c.h.b16 %v242
    %v941 = vunpack.c.l.b16 %v243
    %v942 = vunpack.c.h.b16 %v243
    %v943 = vunpack.c.l.b16 %v244
    %v944 = vunpack.c.h.b16 %v244
    %v945 = vunpack.c.l.b16 %v245
    %v946 = vunpack.c.h.b16 %v245
    %v947 = vunpack.c.l.b16 %v246
    %v948 = vunpack.c.h.b16 %v246
    %v949 = vunpack.c.l.b16 %v247
    %v950 = vunpack.c.h.b16 %v247
    %v951 = vunpack.c.l.b16 %v248
    %v952 = vunpack.c.h.b16 %v248
    %v953 = vunpack.c.l.b16 %v249
    %v954 = vunpack.c.h.b16 %v249
    %v955 = vunpack.c.l.b16 %v250
    %v956 = vunpack.c.h.b16 %v250
    %v957 = vunpack.c.l.b16 %v251
    %v958 = vunpack.c.h.b16 %v251
    %v959 = vunpack.c.l.b16 %v252
    %v960 = vunpack.c.h.b16 %v252
    %v961 = vunpack.c.l.b16 %v253
    %v962 = vunpack.c.h.b16 %v253
    %v963 = vunpack.c.l.b16 %v254
    %v964 = vunpack.c.h.b16 %v254
    %v965 = vunpack.c.l.b16 %v255
    %v966 = vunpack.c.h.b16 %v255
    %v967 = vunpack.c.l.b16 %v256
    %v968 = vunpack.c.h.b16 %v256
    %v969 = vunpack.c.l.b16 %v257
    %v970 = vunpack.c.h.b16 %v257
    %v971 = vunpack.c.l.b16 %v258
    %v972 = vunpack.c.h.b16 %v258
    %v973 = vunpack.c.l.b16 %v259
    %v974 = vunpack.c.h.b16 %v259
    %v975 = vunpack.c.l.b16 %v260
    %v976 = vunpack.c.h.b16 %v260
    %v977 = vunpack.c.l.b16 %v261
    %v978 = vunpack.c.h.b16 %v261
    %v979 = vunpack.c.l.b16 %v262
    %v980 = vunpack.c.h.b16 %v262
    %v981 = vunpack.c.l.b16 %v263
    %v982 = vunpack.c.h.b16 %v263
    %v983 = vunpack.c.l.b16 %v264
    %v984 = vunpack.c.h.b16 %v264
    %v985 = vunpack.c.l.b16 %v265
    %v986 = vunpack.c.h.b16 %v265
    %v987 = vunpack.c.l.b16 %v266
    %v988 = vunpack.c.h.b16 %v266
    %v989 = vunpack.c.l.b16 %v267
    %v990 = vunpack.c.h.b16 %v267
    %v991 = vunpack.c.l.b16 %v268
    %v992 = vunpack.c.h.b16 %v268
    %v993 = vunpack.c.l.b16 %v269
    %v994 = vunpack.c.h.b16 %v269
    %v995 = vunpack.c.l.b16 %v270
    %v996 = vunpack.c.h.b16 %v270
    %v997 = vunpack.c.l.b16 %v271
    %v998 = vunpack.c.h.b16 %v271
    %v999 = vunpack.c.l.b16 %v272
    %v1000 = vunpack.c.h.b16 %v272
    %v1001 = vunpack.c.l.b16 %v273
    %v1002 = vunpack.c.h.b16 %v273
    %v1003 = vunpack.c.l.b16 %v274
    %v1004 = vunpack.c.h.b16 %v274
    %v1005 = vunpack.c.l.b16 %v275
    %v1006 = vunpack.c.h.b16 %v275
    %v1007 = vunpack.c.l.b16 %v276
    %v1008 = vunpack.c.h.b16 %v276
    %v1009 = vunpack.c.l.b16 %v277
    %v1010 = vunpack.c.h.b16 %v277
    %v1011 = vunpack.c.l.b16 %v278
    %v1012 = vunpack.c.h.b16 %v278
    %v1013 = vunpack.c.l.b16 %v279
    %v1014 = vunpack.c.h.b16 %v279
    %v1015 = vunpack.c.l.b16 %v280
    %v1016 = vunpack.c.h.b16 %v280
    %v1017 = vunpack.c.l.b16 %v281
    %v1018 = vunpack.c.h.b16 %v281
    %v1019 = vunpack.c.l.b16 %v282
    %v1020 = vunpack.c.h.b16 %v282
    %v1021 = vunpack.c.l.b16 %v283
    %v1022 = vunpack.c.h.b16 %v283
    %v1023 = vunpack.c.l.b16 %v284
    %v1024 = vunpack.c.h.b16 %v284
    %v1025 = vunpack.c.l.b16 %v285
    %v1026 = vunpack.c.h.b16 %v285
    %v1027 = vunpack.c.l.b16 %v286
    %v1028 = vunpack.c.h.b16 %v286
    %v1029 = vunpack.c.l.b16 %v287
    %v1030 = vunpack.c.h.b16 %v287
    %v1031 = vunpack.c.l.b16 %v288
    %v1032 = vunpack.c.h.b16 %v288
    %v1033 = vunpack.c.l.b16 %v289
    %v1034 = vunpack.c.h.b16 %v289
    %v1035 = vunpack.c.l.b16 %v290
    %v1036 = vunpack.c.h.b16 %v290
    %v1037 = vunpack.c.l.b16 %v291
    %v1038 = vunpack.c.h.b16 %v291
    %v1039 = vunpack.c.l.b16 %v292
    %v1040 = vunpack.c.h.b16 %v292
    %v1041 = vunpack.c.l.b16 %v293
    %v1042 = vunpack.c.h.b16 %v293
    %v1043 = vunpack.c.l.b16 %v294
    %v1044 = vunpack.c.h.b16 %v294
    %v1045 = vunpack.c.l.b16 %v295
    %v1046 = vunpack.c.h.b16 %v295
    %v1047 = vunpack.c.l.b16 %v296
    %v1048 = vunpack.c.h.b16 %v296
    %v1049 = vunpack.c.l.b16 %v297
    %v1050 = vunpack.c.h.b16 %v297
    %v1051 = vunpack.c.l.b16 %v298
    %v1052 = vunpack.c.h.b16 %v298
    %v1053 = vunpack.c.l.b16 %v299
    %v1054 = vunpack.c.h.b16 %v299
    %v1055 = vunpack.c.l.b16 %v300
    %v1056 = vunpack.c.h.b16 %v300
    %v1057 = vunpack.c.l.b16 %v301
    %v1058 = vunpack.c.h.b16 %v301
    %v1059 = vunpack.c.l.b16 %v302
    %v1060 = vunpack.c.h.b16 %v302
    %v1061 = vunpack.c.l.b16 %v303
    %v1062 = vunpack.c.h.b16 %v303
    %v1063 = vunpack.c.l.b16 %v304
    %v1064 = vunpack.c.h.b16 %v304
    %v1065 = vunpack.c.l.b16 %v305
    %v1066 = vunpack.c.h.b16 %v305
    %v1067 = vunpack.c.l.b16 %v306
    %v1068 = vunpack.c.h.b16 %v306
    %v1069 = vunpack.c.l.b16 %v307
    %v1070 = vunpack.c.h.b16 %v307
    %v1071 = vunpack.c.l.b16 %v308
    %v1072 = vunpack.c.h.b16 %v308
    %v1073 = vunpack.c.l.b16 %v309
    %v1074 = vunpack.c.h.b16 %v309
    %v1075 = vunpack.c.l.b16 %v310
    %v1076 = vunpack.c.h.b16 %v310
    %v1077 = vunpack.c.l.b16 %v311
    %v1078 = vunpack.c.h.b16 %v311
    %v1079 = vunpack.c.l.b16 %v312
    %v1080 = vunpack.c.h.b16 %v312
    %v1081 = vunpack.c.l.b16 %v313
    %v1082 = vunpack.c.h.b16 %v313
    %v1083 = vunpack.c.l.b16 %v314
    %v1084 = vunpack.c.h.b16 %v314
    %v1085 = vunpack.c.l.b16 %v315
    %v1086 = vunpack.c.h.b16 %v315
    %v1087 = vunpack.c.l.b16 %v316
    %v1088 = vunpack.c.h.b16 %v316
    %v1089 = vunpack.c.l.b16 %v317
    %v1090 = vunpack.c.h.b16 %v317
    %v1091 = vunpack.c.l.b16 %v318
    %v1092 = vunpack.c.h.b16 %v318
    %v1093 = vunpack.c.l.b16 %v319
    %v1094 = vunpack.c.h.b16 %v319
    %v1095 = vunpack.c.l.b16 %v320
    %v1096 = vunpack.c.h.b16 %v320
    %v1097 = vunpack.c.l.b16 %v321
    %v1098 = vunpack.c.h.b16 %v321
    %v1099 = vunpack.c.l.b16 %v322
    %v1100 = vunpack.c.h.b16 %v322
    %v1101 = vunpack.c.l.b16 %v323
    %v1102 = vunpack.c.h.b16 %v323
    %v1103 = vunpack.c.l.b16 %v324
    %v1104 = vunpack.c.h.b16 %v324
    %v1105 = vunpack.c.l.b16 %v325
    %v1106 = vunpack.c.h.b16 %v325
    %v1107 = vunpack.c.l.b16 %v326
    %v1108 = vunpack.c.h.b16 %v326
    %v1109 = vunpack.c.l.b16 %v327
    %v1110 = vunpack.c.h.b16 %v327
    %v1111 = vunpack.c.l.b16 %v328
    %v1112 = vunpack.c.h.b16 %v328
    %v1113 = vunpack.c.l.b16 %v329
    %v1114 = vunpack.c.h.b16 %v329
    %v1115 = vunpack.c.l.b16 %v330
    %v1116 = vunpack.c.h.b16 %v330
    %v1117 = vunpack.c.l.b16 %v331
    %v1118 = vunpack.c.h.b16 %v331
    %v1119 = vunpack.c.l.b16 %v332
    %v1120 = vunpack.c.h.b16 %v332
    %v1121 = vunpack.c.l.b16 %v333
    %v1122 = vunpack.c.h.b16 %v333
    %v1123 = vunpack.c.l.b16 %v334
    %v1124 = vunpack.c.h.b16 %v334
    %v1125 = vunpack.c.l.b16 %v335
    %v1126 = vunpack.c.h.b16 %v335
    %v1127 = vunpack.c.l.b16 %v336
    %v1128 = vunpack.c.h.b16 %v336
    %v1129 = vunpack.c.l.b16 %v337
    %v1130 = vunpack.c.h.b16 %v337
    %v1131 = vunpack.c.l.b16 %v338
    %v1132 = vunpack.c.h.b16 %v338
    %v1133 = vunpack.c.l.b16 %v339
    %v1134 = vunpack.c.h.b16 %v339
    %v1135 = vunpack.c.l.b16 %v340
    %v1136 = vunpack.c.h.b16 %v340
    %v1137 = vunpack.c.l.b16 %v341
    %v1138 = vunpack.c.h.b16 %v341
    %v1139 = vunpack.c.l.b16 %v342
    %v1140 = vunpack.c.h.b16 %v342
    %v1141 = vunpack.c.l.b16 %v343
    %v1142 = vunpack.c.h.b16 %v343
    %v1143 = vunpack.c.l.b16 %v344
    %v1144 = vunpack.c.h.b16 %v344
    %v1145 = vunpack.c.l.b16 %v345
    %v1146 = vunpack.c.h.b16 %v345
    %v1147 = vunpack.c.l.b16 %v346
    %v1148 = vunpack.c.h.b16 %v346
    %v1149 = vunpack.c.l.b16 %v347
    %v1150 = vunpack.c.h.b16 %v347
    %v1151 = vunpack.c.l.b16 %v348
    %v1152 = vunpack.c.h.b16 %v348
    %v1153 = vunpack.c.l.b16 %v349
    %v1154 = vunpack.c.h.b16 %v349
    %v1155 = vunpack.c.l.b16 %v350
    %v1156 = vunpack.c.h.b16 %v350
    %v1157 = vpack.c.b16 %v649, %v645
    %v1158 = vpack.c.b16 %v650, %v646
    %v1159 = vpack.c.b16 %v651, %v647
    %v1160 = vpack.c.b16 %v652, %v648
    %v1161 = vpack.c.b16 %v657, %v653
    %v1162 = vpack.c.b16 %v658, %v654
    %v1163 = vpack.c.b16 %v659, %v655
    %v1164 = vpack.c.b16 %v660, %v656
    %v1165 = vpack.c.b16 %v665, %v661
    %v1166 = vpack.c.b16 %v666, %v662
    %v1167 = vpack.c.b16 %v667, %v663
    %v1168 = vpack.c.b16 %v668, %v664
    %v1169 = vpack.c.b16 %v673, %v669
    %v1170 = vpack.c.b16 %v674, %v670
    %v1171 = vpack.c.b16 %v675, %v671
    %v1172 = vpack.c.b16 %v676, %v672
    %v1173 = vpack.c.b16 %v681, %v677
    %v1174 = vpack.c.b16 %v682, %v678
    %v1175 = vpack.c.b16 %v683, %v679
    %v1176 = vpack.c.b16 %v684, %v680
    %v1177 = vpack.c.b16 %v689, %v685
    %v1178 = vpack.c.b16 %v690, %v686
    %v1179 = vpack.c.b16 %v691, %v687
    %v1180 = vpack.c.b16 %v692, %v688
    %v1181 = vpack.c.b16 %v697, %v693
    %v1182 = vpack.c.b16 %v698, %v694
    %v1183 = vpack.c.b16 %v699, %v695
    %v1184 = vpack.c.b16 %v700, %v696
    %v1185 = vpack.c.b16 %v705, %v701
    %v1186 = vpack.c.b16 %v706, %v702
    %v1187 = vpack.c.b16 %v707, %v703
    %v1188 = vpack.c.b16 %v708, %v704
    %v1189 = vpack.c.b16 %v713, %v709
    %v1190 = vpack.c.b16 %v714, %v710
    %v1191 = vpack.c.b16 %v715, %v711
    %v1192 = vpack.c.b16 %v716, %v712
    %v1193 = vpack.c.b16 %v721, %v717
    %v1194 = vpack.c.b16 %v722, %v718
    %v1195 = vpack.c.b16 %v723, %v719
    %v1196 = vpack.c.b16 %v724, %v720
    %v1197 = vpack.c.b16 %v729, %v725
    %v1198 = vpack.c.b16 %v730, %v726
    %v1199 = vpack.c.b16 %v731, %v727
    %v1200 = vpack.c.b16 %v732, %v728
    %v1201 = vpack.c.b16 %v737, %v733
    %v1202 = vpack.c.b16 %v738, %v734
    %v1203 = vpack.c.b16 %v739, %v735
    %v1204 = vpack.c.b16 %v740, %v736
    %v1205 = vpack.c.b16 %v745, %v741
    %v1206 = vpack.c.b16 %v746, %v742
    %v1207 = vpack.c.b16 %v747, %v743
    %v1208 = vpack.c.b16 %v748, %v744
    %v1209 = vpack.c.b16 %v753, %v749
    %v1210 = vpack.c.b16 %v754, %v750
    %v1211 = vpack.c.b16 %v755, %v751
    %v1212 = vpack.c.b16 %v756, %v752
    %v1213 = vpack.c.b16 %v761, %v757
    %v1214 = vpack.c.b16 %v762, %v758
    %v1215 = vpack.c.b16 %v763, %v759
    %v1216 = vpack.c.b16 %v764, %v760
    %v1217 = vpack.c.b16 %v769, %v765
    %v1218 = vpack.c.b16 %v770, %v766
    %v1219 = vpack.c.b16 %v771, %v767
    %v1220 = vpack.c.b16 %v772, %v768
    %v1221 = vpack.c.b16 %v777, %v773
    %v1222 = vpack.c.b16 %v778, %v774
    %v1223 = vpack.c.b16 %v779, %v775
    %v1224 = vpack.c.b16 %v780, %v776
    %v1225 = vpack.c.b16 %v785, %v781
    %v1226 = vpack.c.b16 %v786, %v782
    %v1227 = vpack.c.b16 %v787, %v783
    %v1228 = vpack.c.b16 %v788, %v784
    %v1229 = vpack.c.b16 %v793, %v789
    %v1230 = vpack.c.b16 %v794, %v790
    %v1231 = vpack.c.b16 %v795, %v791
    %v1232 = vpack.c.b16 %v796, %v792
    %v1233 = vpack.c.b16 %v801, %v797
    %v1234 = vpack.c.b16 %v802, %v798
    %v1235 = vpack.c.b16 %v803, %v799
    %v1236 = vpack.c.b16 %v804, %v800
    %v1237 = vpack.c.b16 %v809, %v805
    %v1238 = vpack.c.b16 %v810, %v806
    %v1239 = vpack.c.b16 %v811, %v807
    %v1240 = vpack.c.b16 %v812, %v808
    %v1241 = vpack.c.b16 %v817, %v813
    %v1242 = vpack.c.b16 %v818, %v814
    %v1243 = vpack.c.b16 %v819, %v815
    %v1244 = vpack.c.b16 %v820, %v816
    %v1245 = vpack.c.b16 %v825, %v821
    %v1246 = vpack.c.b16 %v826, %v822
    %v1247 = vpack.c.b16 %v827, %v823
    %v1248 = vpack.c.b16 %v828, %v824
    %v1249 = vpack.c.b16 %v833, %v829
    %v1250 = vpack.c.b16 %v834, %v830
    %v1251 = vpack.c.b16 %v835, %v831
    %v1252 = vpack.c.b16 %v836, %v832
    %v1253 = vpack.c.b16 %v841, %v837
    %v1254 = vpack.c.b16 %v842, %v838
    %v1255 = vpack.c.b16 %v843, %v839
    %v1256 = vpack.c.b16 %v844, %v840
    %v1257 = vpack.c.b16 %v849, %v845
    %v1258 = vpack.c.b16 %v850, %v846
    %v1259 = vpack.c.b16 %v851, %v847
    %v1260 = vpack.c.b16 %v852, %v848
    %v1261 = vpack.c.b16 %v857, %v853
    %v1262 = vpack.c.b16 %v858, %v854
    %v1263 = vpack.c.b16 %v859, %v855
    %v1264 = vpack.c.b16 %v860, %v856
    %v1265 = vpack.c.b16 %v865, %v861
    %v1266 = vpack.c.b16 %v866, %v862
    %v1267 = vpack.c.b16 %v867, %v863
    %v1268 = vpack.c.b16 %v868, %v864
    %v1269 = vpack.c.b16 %v873, %v869
    %v1270 = vpack.c.b16 %v874, %v870
    %v1271 = vpack.c.b16 %v875, %v871
    %v1272 = vpack.c.b16 %v876, %v872
    %v1273 = vpack.c.b16 %v881, %v877
    %v1274 = vpack.c.b16 %v882, %v878
    %v1275 = vpack.c.b16 %v883, %v879
    %v1276 = vpack.c.b16 %v884, %v880
    %v1277 = vpack.c.b16 %v889, %v885
    %v1278 = vpack.c.b16 %v890, %v886
    %v1279 = vpack.c.b16 %v891, %v887
    %v1280 = vpack.c.b16 %v892, %v888
    %v1281 = vpack.c.b16 %v897, %v893
    %v1282 = vpack.c.b16 %v898, %v894
    %v1283 = vpack.c.b16 %v899, %v895
    %v1284 = vpack.c.b16 %v900, %v896
    %v1285 = vpack.c.b16 %v905, %v901
    %v1286 = vpack.c.b16 %v906, %v902
    %v1287 = vpack.c.b16 %v907, %v903
    %v1288 = vpack.c.b16 %v908, %v904
    %v1289 = vpack.c.b16 %v913, %v909
    %v1290 = vpack.c.b16 %v914, %v910
    %v1291 = vpack.c.b16 %v915, %v911
    %v1292 = vpack.c.b16 %v916, %v912
    %v1293 = vpack.c.b16 %v921, %v917
    %v1294 = vpack.c.b16 %v922, %v918
    %v1295 = vpack.c.b16 %v923, %v919
    %v1296 = vpack.c.b16 %v924, %v920
    %v1297 = vpack.c.b16 %v929, %v925
    %v1298 = vpack.c.b16 %v930, %v926
    %v1299 = vpack.c.b16 %v931, %v927
    %v1300 = vpack.c.b16 %v932, %v928
    %v1301 = vpack.c.b16 %v937, %v933
    %v1302 = vpack.c.b16 %v938, %v934
    %v1303 = vpack.c.b16 %v939, %v935
    %v1304 = vpack.c.b16 %v940, %v936
    %v1305 = vpack.c.b16 %v945, %v941
    %v1306 = vpack.c.b16 %v946, %v942
    %v1307 = vpack.c.b16 %v947, %v943
    %v1308 = vpack.c.b16 %v948, %v944
    %v1309 = vpack.c.b16 %v953, %v949
    %v1310 = vpack.c.b16 %v954, %v950
    %v1311 = vpack.c.b16 %v955, %v951
    %v1312 = vpack.c.b16 %v956, %v952
    %v1313 = vpack.c.b16 %v961, %v957
    %v1314 = vpack.c.b16 %v962, %v958
    %v1315 = vpack.c.b16 %v963, %v959
    %v1316 = vpack.c.b16 %v964, %v960
    %v1317 = vpack.c.b16 %v969, %v965
    %v1318 = vpack.c.b16 %v970, %v966
    %v1319 = vpack.c.b16 %v971, %v967
    %v1320 = vpack.c.b16 %v972, %v968
    %v1321 = vpack.c.b16 %v977, %v973
    %v1322 = vpack.c.b16 %v978, %v974
    %v1323 = vpack.c.b16 %v979, %v975
    %v1324 = vpack.c.b16 %v980, %v976
    %v1325 = vpack.c.b16 %v985, %v981
    %v1326 = vpack.c.b16 %v986, %v982
    %v1327 = vpack.c.b16 %v987, %v983
    %v1328 = vpack.c.b16 %v988, %v984
    %v1329 = vpack.c.b16 %v993, %v989
    %v1330 = vpack.c.b16 %v994, %v990
    %v1331 = vpack.c.b16 %v995, %v991
    %v1332 = vpack.c.b16 %v996, %v992
    %v1333 = vpack.c.b16 %v1001, %v997
    %v1334 = vpack.c.b16 %v1002, %v998
    %v1335 = vpack.c.b16 %v1003, %v999
    %v1336 = vpack.c.b16 %v1004, %v1000
    %v1337 = vpack.c.b16 %v1009, %v1005
    %v1338 = vpack.c.b16 %v1010, %v1006
    %v1339 = vpack.c.b16 %v1011, %v1007
    %v1340 = vpack.c.b16 %v1012, %v1008
    %v1341 = vpack.c.b16 %v1017, %v1013
    %v1342 = vpack.c.b16 %v1018, %v1014
    %v1343 = vpack.c.b16 %v1019, %v1015
    %v1344 = vpack.c.b16 %v1020, %v1016
    %v1345 = vpack.c.b16 %v1025, %v1021
    %v1346 = vpack.c.b16 %v1026, %v1022
    %v1347 = vpack.c.b16 %v1027, %v1023
    %v1348 = vpack.c.b16 %v1028, %v1024
    %v1349 = vpack.c.b16 %v1033, %v1029
    %v1350 = vpack.c.b16 %v1034, %v1030
    %v1351 = vpack.c.b16 %v1035, %v1031
    %v1352 = vpack.c.b16 %v1036, %v1032
    %v1353 = vpack.c.b16 %v1041, %v1037
    %v1354 = vpack.c.b16 %v1042, %v1038
    %v1355 = vpack.c.b16 %v1043, %v1039
    %v1356 = vpack.c.b16 %v1044, %v1040
    %v1357 = vpack.c.b16 %v1049, %v1045
    %v1358 = vpack.c.b16 %v1050, %v1046
    %v1359 = vpack.c.b16 %v1051, %v1047
    %v1360 = vpack.c.b16 %v1052, %v1048
    %v1361 = vpack.c.b16 %v1057, %v1053
    %v1362 = vpack.c.b16 %v1058, %v1054
    %v1363 = vpack.c.b16 %v1059, %v1055
    %v1364 = vpack.c.b16 %v1060, %v1056
    %v1365 = vpack.c.b16 %v1065, %v1061
    %v1366 = vpack.c.b16 %v1066, %v1062
    %v1367 = vpack.c.b16 %v1067, %v1063
    %v1368 = vpack.c.b16 %v1068, %v1064
    %v1369 = vpack.c.b16 %v1073, %v1069
    %v1370 = vpack.c.b16 %v1074, %v1070
    %v1371 = vpack.c.b16 %v1075, %v1071
    %v1372 = vpack.c.b16 %v1076, %v1072
    %v1373 = vpack.c.b16 %v1081, %v1077
    %v1374 = vpack.c.b16 %v1082, %v1078
    %v1375 = vpack.c.b16 %v1083, %v1079
    %v1376 = vpack.c.b16 %v1084, %v1080
    %v1377 = vpack.c.b16 %v1089, %v1085
    %v1378 = vpack.c.b16 %v1090, %v1086
    %v1379 = vpack.c.b16 %v1091, %v1087
    %v1380 = vpack.c.b16 %v1092, %v1088
    %v1381 = vpack.c.b16 %v1097, %v1093
    %v1382 = vpack.c.b16 %v1098, %v1094
    %v1383 = vpack.c.b16 %v1099, %v1095
    %v1384 = vpack.c.b16 %v1100, %v1096
    %v1385 = vpack.c.b16 %v1105, %v1101
    %v1386 = vpack.c.b16 %v1106, %v1102
    %v1387 = vpack.c.b16 %v1107, %v1103
    %v1388 = vpack.c.b16 %v1108, %v1104
    %v1389 = vpack.c.b16 %v1113, %v1109
    %v1390 = vpack.c.b16 %v1114, %v1110
    %v1391 = vpack.c.b16 %v1115, %v1111
    %v1392 = vpack.c.b16 %v1116, %v1112
    %v1393 = vpack.c.b16 %v1121, %v1117
    %v1394 = vpack.c.b16 %v1122, %v1118
    %v1395 = vpack.c.b16 %v1123, %v1119
    %v1396 = vpack.c.b16 %v1124, %v1120
    %v1397 = vpack.c.b16 %v1129, %v1125
    %v1398 = vpack.c.b16 %v1130, %v1126
    %v1399 = vpack.c.b16 %v1131, %v1127
    %v1400 = vpack.c.b16 %v1132, %v1128
    %v1401 = vpack.c.b16 %v1137, %v1133
    %v1402 = vpack.c.b16 %v1138, %v1134
    %v1403 = vpack.c.b16 %v1139, %v1135
    %v1404 = vpack.c.b16 %v1140, %v1136
    %v1405 = vpack.c.b16 %v1145, %v1141
    %v1406 = vpack.c.b16 %v1146, %v1142
    %v1407 = vpack.c.b16 %v1147, %v1143
    %v1408 = vpack.c.b16 %v1148, %v1144
    %v1409 = vpack.c.b16 %v1153, %v1149
    %v1410 = vpack.c.b16 %v1154, %v1150
    %v1411 = vpack.c.b16 %v1155, %v1151
    %v1412 = vpack.c.b16 %v1156, %v1152
    %1669 = vmatpush.bf16.msra.mxu0 %v1185
    %1670 = vmatpush.bf16.msra.mxu0 %v1181
    %1671 = vmatpush.bf16.msra.mxu0 %v1177
    %1672 = vmatpush.bf16.msra.mxu0 %v1173
    %1673 = vmatpush.bf16.msra.mxu0 %v1169
    %1674 = vmatpush.bf16.msra.mxu0 %v1165
    %1675 = vmatpush.bf16.msra.mxu0 %v1161
    %1676 = vmatpush.bf16.msra.mxu0 %v1157
    %1677 = vmatmul.bf16.gmra.mxu0 %v373
    %v1678 = vpop.f32.mrf.mxu0
    %v1679 = vadd.f32 %v353, %v1678
    %v1680 = vpop.f32.mrf.mxu0
    %1681 = vdwg.mxu0
    %1682 = vmatpush.bf16.msra.mxu0 %v1217
    %1683 = vmatpush.bf16.msra.mxu0 %v1213
    %1684 = vmatpush.bf16.msra.mxu0 %v1209
    %1685 = vmatpush.bf16.msra.mxu0 %v1205
    %1686 = vmatpush.bf16.msra.mxu0 %v1201
    %1687 = vmatpush.bf16.msra.mxu0 %v1197
    %1688 = vmatpush.bf16.msra.mxu0 %v1193
    %1689 = vmatpush.bf16.msra.mxu0 %v1189
    %1690 = vmatmul.bf16.gmra.mxu0 %v374
    %v1691 = vpop.f32.mrf.mxu0
    %v1692 = vadd.f32 %v1679, %v1691
    %v1693 = vpop.f32.mrf.mxu0
    %1694 = vdwg.mxu0
    %1695 = vmatpush.bf16.msra.mxu0 %v1249
    %1696 = vmatpush.bf16.msra.mxu0 %v1245
    %1697 = vmatpush.bf16.msra.mxu0 %v1241
    %1698 = vmatpush.bf16.msra.mxu0 %v1237
    %1699 = vmatpush.bf16.msra.mxu0 %v1233
    %1700 = vmatpush.bf16.msra.mxu0 %v1229
    %1701 = vmatpush.bf16.msra.mxu0 %v1225
    %1702 = vmatpush.bf16.msra.mxu0 %v1221
    %1703 = vmatmul.bf16.gmra.mxu0 %v375
    %v1704 = vpop.f32.mrf.mxu0
    %v1705 = vadd.f32 %v1692, %v1704
    %v1706 = vpop.f32.mrf.mxu0
    %1707 = vdwg.mxu0
    %1708 = vmatpush.bf16.msra.mxu0 %v1281
    %1709 = vmatpush.bf16.msra.mxu0 %v1277
    %1710 = vmatpush.bf16.msra.mxu0 %v1273
    %1711 = vmatpush.bf16.msra.mxu0 %v1269
    %1712 = vmatpush.bf16.msra.mxu0 %v1265
    %1713 = vmatpush.bf16.msra.mxu0 %v1261
    %1714 = vmatpush.bf16.msra.mxu0 %v1257
    %1715 = vmatpush.bf16.msra.mxu0 %v1253
    %1716 = vmatmul.bf16.gmra.mxu0 %v376
    %v1717 = vpop.f32.mrf.mxu0
    %v1718 = vadd.f32 %v1705, %v1717
    %v1719 = vpop.f32.mrf.mxu0
    %1720 = vdwg.mxu0
    %1721 = vmatpush.bf16.msra.mxu0 %v1313
    %1722 = vmatpush.bf16.msra.mxu0 %v1309
    %1723 = vmatpush.bf16.msra.mxu0 %v1305
    %1724 = vmatpush.bf16.msra.mxu0 %v1301
    %1725 = vmatpush.bf16.msra.mxu0 %v1297
    %1726 = vmatpush.bf16.msra.mxu0 %v1293
    %1727 = vmatpush.bf16.msra.mxu0 %v1289
    %1728 = vmatpush.bf16.msra.mxu0 %v1285
    %1729 = vmatmul.bf16.gmra.mxu0 %v377
    %v1730 = vpop.f32.mrf.mxu0
    %v1731 = vadd.f32 %v1718, %v1730
    %v1732 = vpop.f32.mrf.mxu0
    %1733 = vdwg.mxu0
    %1734 = vmatpush.bf16.msra.mxu0 %v1345
    %1735 = vmatpush.bf16.msra.mxu0 %v1341
    %1736 = vmatpush.bf16.msra.mxu0 %v1337
    %1737 = vmatpush.bf16.msra.mxu0 %v1333
    %1738 = vmatpush.bf16.msra.mxu0 %v1329
    %1739 = vmatpush.bf16.msra.mxu0 %v1325
    %1740 = vmatpush.bf16.msra.mxu0 %v1321
    %1741 = vmatpush.bf16.msra.mxu0 %v1317
    %1742 = vmatmul.bf16.gmra.mxu0 %v378
    %v1743 = vpop.f32.mrf.mxu0
    %v1744 = vadd.f32 %v1731, %v1743
    %v1745 = vpop.f32.mrf.mxu0
    %1746 = vdwg.mxu0
    %1747 = vmatpush.bf16.msra.mxu0 %v1377
    %1748 = vmatpush.bf16.msra.mxu0 %v1373
    %1749 = vmatpush.bf16.msra.mxu0 %v1369
    %1750 = vmatpush.bf16.msra.mxu0 %v1365
    %1751 = vmatpush.bf16.msra.mxu0 %v1361
    %1752 = vmatpush.bf16.msra.mxu0 %v1357
    %1753 = vmatpush.bf16.msra.mxu0 %v1353
    %1754 = vmatpush.bf16.msra.mxu0 %v1349
    %1755 = vmatmul.bf16.gmra.mxu0 %v379
    %v1756 = vpop.f32.mrf.mxu0
    %v1757 = vadd.f32 %v1744, %v1756
    %v1758 = vpop.f32.mrf.mxu0
    %1759 = vdwg.mxu0
    %1760 = vmatpush.bf16.msra.mxu0 %v1409
    %1761 = vmatpush.bf16.msra.mxu0 %v1405
    %1762 = vmatpush.bf16.msra.mxu0 %v1401
    %1763 = vmatpush.bf16.msra.mxu0 %v1397
    %1764 = vmatpush.bf16.msra.mxu0 %v1393
    %1765 = vmatpush.bf16.msra.mxu0 %v1389
    %1766 = vmatpush.bf16.msra.mxu0 %v1385
    %1767 = vmatpush.bf16.msra.mxu0 %v1381
    %1768 = vmatmul.bf16.gmra.mxu0 %v380
    %v1769 = vpop.f32.mrf.mxu0
    %v1770 = vadd.f32 %v1757, %v1769
    %v1771 = vpop.f32.mrf.mxu0
    %1772 = vdwg.mxu0
    %1773 = vmatpush.bf16.msra.mxu0 %v1186
    %1774 = vmatpush.bf16.msra.mxu0 %v1182
    %1775 = vmatpush.bf16.msra.mxu0 %v1178
    %1776 = vmatpush.bf16.msra.mxu0 %v1174
    %1777 = vmatpush.bf16.msra.mxu0 %v1170
    %1778 = vmatpush.bf16.msra.mxu0 %v1166
    %1779 = vmatpush.bf16.msra.mxu0 %v1162
    %1780 = vmatpush.bf16.msra.mxu0 %v1158
    %1781 = vmatmul.bf16.gmra.mxu0 %v373
    %v1782 = vpop.f32.mrf.mxu0
    %v1783 = vadd.f32 %v354, %v1782
    %v1784 = vpop.f32.mrf.mxu0
    %1785 = vdwg.mxu0
    %1786 = vmatpush.bf16.msra.mxu0 %v1218
    %1787 = vmatpush.bf16.msra.mxu0 %v1214
    %1788 = vmatpush.bf16.msra.mxu0 %v1210
    %1789 = vmatpush.bf16.msra.mxu0 %v1206
    %1790 = vmatpush.bf16.msra.mxu0 %v1202
    %1791 = vmatpush.bf16.msra.mxu0 %v1198
    %1792 = vmatpush.bf16.msra.mxu0 %v1194
    %1793 = vmatpush.bf16.msra.mxu0 %v1190
    %1794 = vmatmul.bf16.gmra.mxu0 %v374
    %v1795 = vpop.f32.mrf.mxu0
    %v1796 = vadd.f32 %v1783, %v1795
    %v1797 = vpop.f32.mrf.mxu0
    %1798 = vdwg.mxu0
    %1799 = vmatpush.bf16.msra.mxu0 %v1250
    %1800 = vmatpush.bf16.msra.mxu0 %v1246
    %1801 = vmatpush.bf16.msra.mxu0 %v1242
    %1802 = vmatpush.bf16.msra.mxu0 %v1238
    %1803 = vmatpush.bf16.msra.mxu0 %v1234
    %1804 = vmatpush.bf16.msra.mxu0 %v1230
    %1805 = vmatpush.bf16.msra.mxu0 %v1226
    %1806 = vmatpush.bf16.msra.mxu0 %v1222
    %1807 = vmatmul.bf16.gmra.mxu0 %v375
    %v1808 = vpop.f32.mrf.mxu0
    %v1809 = vadd.f32 %v1796, %v1808
    %v1810 = vpop.f32.mrf.mxu0
    %1811 = vdwg.mxu0
    %1812 = vmatpush.bf16.msra.mxu0 %v1282
    %1813 = vmatpush.bf16.msra.mxu0 %v1278
    %1814 = vmatpush.bf16.msra.mxu0 %v1274
    %1815 = vmatpush.bf16.msra.mxu0 %v1270
    %1816 = vmatpush.bf16.msra.mxu0 %v1266
    %1817 = vmatpush.bf16.msra.mxu0 %v1262
    %1818 = vmatpush.bf16.msra.mxu0 %v1258
    %1819 = vmatpush.bf16.msra.mxu0 %v1254
    %1820 = vmatmul.bf16.gmra.mxu0 %v376
    %v1821 = vpop.f32.mrf.mxu0
    %v1822 = vadd.f32 %v1809, %v1821
    %v1823 = vpop.f32.mrf.mxu0
    %1824 = vdwg.mxu0
    %1825 = vmatpush.bf16.msra.mxu0 %v1314
    %1826 = vmatpush.bf16.msra.mxu0 %v1310
    %1827 = vmatpush.bf16.msra.mxu0 %v1306
    %1828 = vmatpush.bf16.msra.mxu0 %v1302
    %1829 = vmatpush.bf16.msra.mxu0 %v1298
    %1830 = vmatpush.bf16.msra.mxu0 %v1294
    %1831 = vmatpush.bf16.msra.mxu0 %v1290
    %1832 = vmatpush.bf16.msra.mxu0 %v1286
    %1833 = vmatmul.bf16.gmra.mxu0 %v377
    %v1834 = vpop.f32.mrf.mxu0
    %v1835 = vadd.f32 %v1822, %v1834
    %v1836 = vpop.f32.mrf.mxu0
    %1837 = vdwg.mxu0
    %1838 = vmatpush.bf16.msra.mxu0 %v1346
    %1839 = vmatpush.bf16.msra.mxu0 %v1342
    %1840 = vmatpush.bf16.msra.mxu0 %v1338
    %1841 = vmatpush.bf16.msra.mxu0 %v1334
    %1842 = vmatpush.bf16.msra.mxu0 %v1330
    %1843 = vmatpush.bf16.msra.mxu0 %v1326
    %1844 = vmatpush.bf16.msra.mxu0 %v1322
    %1845 = vmatpush.bf16.msra.mxu0 %v1318
    %1846 = vmatmul.bf16.gmra.mxu0 %v378
    %v1847 = vpop.f32.mrf.mxu0
    %v1848 = vadd.f32 %v1835, %v1847
    %v1849 = vpop.f32.mrf.mxu0
    %1850 = vdwg.mxu0
    %1851 = vmatpush.bf16.msra.mxu0 %v1378
    %1852 = vmatpush.bf16.msra.mxu0 %v1374
    %1853 = vmatpush.bf16.msra.mxu0 %v1370
    %1854 = vmatpush.bf16.msra.mxu0 %v1366
    %1855 = vmatpush.bf16.msra.mxu0 %v1362
    %1856 = vmatpush.bf16.msra.mxu0 %v1358
    %1857 = vmatpush.bf16.msra.mxu0 %v1354
    %1858 = vmatpush.bf16.msra.mxu0 %v1350
    %1859 = vmatmul.bf16.gmra.mxu0 %v379
    %v1860 = vpop.f32.mrf.mxu0
    %v1861 = vadd.f32 %v1848, %v1860
    %v1862 = vpop.f32.mrf.mxu0
    %1863 = vdwg.mxu0
    %1864 = vmatpush.bf16.msra.mxu0 %v1410
    %1865 = vmatpush.bf16.msra.mxu0 %v1406
    %1866 = vmatpush.bf16.msra.mxu0 %v1402
    %1867 = vmatpush.bf16.msra.mxu0 %v1398
    %1868 = vmatpush.bf16.msra.mxu0 %v1394
    %1869 = vmatpush.bf16.msra.mxu0 %v1390
    %1870 = vmatpush.bf16.msra.mxu0 %v1386
    %1871 = vmatpush.bf16.msra.mxu0 %v1382
    %1872 = vmatmul.bf16.gmra.mxu0 %v380
    %v1873 = vpop.f32.mrf.mxu0
    %v1874 = vadd.f32 %v1861, %v1873
    %v1875 = vpop.f32.mrf.mxu0
    %1876 = vdwg.mxu0
    %1877 = vmatpush.bf16.msra.mxu0 %v1187
    %1878 = vmatpush.bf16.msra.mxu0 %v1183
    %1879 = vmatpush.bf16.msra.mxu0 %v1179
    %1880 = vmatpush.bf16.msra.mxu0 %v1175
    %1881 = vmatpush.bf16.msra.mxu0 %v1171
    %1882 = vmatpush.bf16.msra.mxu0 %v1167
    %1883 = vmatpush.bf16.msra.mxu0 %v1163
    %1884 = vmatpush.bf16.msra.mxu0 %v1159
    %1885 = vmatmul.bf16.gmra.mxu0 %v373
    %v1886 = vpop.f32.mrf.mxu0
    %v1887 = vadd.f32 %v355, %v1886
    %v1888 = vpop.f32.mrf.mxu0
    %1889 = vdwg.mxu0
    %1890 = vmatpush.bf16.msra.mxu0 %v1219
    %1891 = vmatpush.bf16.msra.mxu0 %v1215
    %1892 = vmatpush.bf16.msra.mxu0 %v1211
    %1893 = vmatpush.bf16.msra.mxu0 %v1207
    %1894 = vmatpush.bf16.msra.mxu0 %v1203
    %1895 = vmatpush.bf16.msra.mxu0 %v1199
    %1896 = vmatpush.bf16.msra.mxu0 %v1195
    %1897 = vmatpush.bf16.msra.mxu0 %v1191
    %1898 = vmatmul.bf16.gmra.mxu0 %v374
    %v1899 = vpop.f32.mrf.mxu0
    %v1900 = vadd.f32 %v1887, %v1899
    %v1901 = vpop.f32.mrf.mxu0
    %1902 = vdwg.mxu0
    %1903 = vmatpush.bf16.msra.mxu0 %v1251
    %1904 = vmatpush.bf16.msra.mxu0 %v1247
    %1905 = vmatpush.bf16.msra.mxu0 %v1243
    %1906 = vmatpush.bf16.msra.mxu0 %v1239
    %1907 = vmatpush.bf16.msra.mxu0 %v1235
    %1908 = vmatpush.bf16.msra.mxu0 %v1231
    %1909 = vmatpush.bf16.msra.mxu0 %v1227
    %1910 = vmatpush.bf16.msra.mxu0 %v1223
    %1911 = vmatmul.bf16.gmra.mxu0 %v375
    %v1912 = vpop.f32.mrf.mxu0
    %v1913 = vadd.f32 %v1900, %v1912
    %v1914 = vpop.f32.mrf.mxu0
    %1915 = vdwg.mxu0
    %1916 = vmatpush.bf16.msra.mxu0 %v1283
    %1917 = vmatpush.bf16.msra.mxu0 %v1279
    %1918 = vmatpush.bf16.msra.mxu0 %v1275
    %1919 = vmatpush.bf16.msra.mxu0 %v1271
    %1920 = vmatpush.bf16.msra.mxu0 %v1267
    %1921 = vmatpush.bf16.msra.mxu0 %v1263
    %1922 = vmatpush.bf16.msra.mxu0 %v1259
    %1923 = vmatpush.bf16.msra.mxu0 %v1255
    %1924 = vmatmul.bf16.gmra.mxu0 %v376
    %v1925 = vpop.f32.mrf.mxu0
    %v1926 = vadd.f32 %v1913, %v1925
    %v1927 = vpop.f32.mrf.mxu0
    %1928 = vdwg.mxu0
    %1929 = vmatpush.bf16.msra.mxu0 %v1315
    %1930 = vmatpush.bf16.msra.mxu0 %v1311
    %1931 = vmatpush.bf16.msra.mxu0 %v1307
    %1932 = vmatpush.bf16.msra.mxu0 %v1303
    %1933 = vmatpush.bf16.msra.mxu0 %v1299
    %1934 = vmatpush.bf16.msra.mxu0 %v1295
    %1935 = vmatpush.bf16.msra.mxu0 %v1291
    %1936 = vmatpush.bf16.msra.mxu0 %v1287
    %1937 = vmatmul.bf16.gmra.mxu0 %v377
    %v1938 = vpop.f32.mrf.mxu0
    %v1939 = vadd.f32 %v1926, %v1938
    %v1940 = vpop.f32.mrf.mxu0
    %1941 = vdwg.mxu0
    %1942 = vmatpush.bf16.msra.mxu0 %v1347
    %1943 = vmatpush.bf16.msra.mxu0 %v1343
    %1944 = vmatpush.bf16.msra.mxu0 %v1339
    %1945 = vmatpush.bf16.msra.mxu0 %v1335
    %1946 = vmatpush.bf16.msra.mxu0 %v1331
    %1947 = vmatpush.bf16.msra.mxu0 %v1327
    %1948 = vmatpush.bf16.msra.mxu0 %v1323
    %1949 = vmatpush.bf16.msra.mxu0 %v1319
    %1950 = vmatmul.bf16.gmra.mxu0 %v378
    %v1951 = vpop.f32.mrf.mxu0
    %v1952 = vadd.f32 %v1939, %v1951
    %v1953 = vpop.f32.mrf.mxu0
    %1954 = vdwg.mxu0
    %1955 = vmatpush.bf16.msra.mxu0 %v1379
    %1956 = vmatpush.bf16.msra.mxu0 %v1375
    %1957 = vmatpush.bf16.msra.mxu0 %v1371
    %1958 = vmatpush.bf16.msra.mxu0 %v1367
    %1959 = vmatpush.bf16.msra.mxu0 %v1363
    %1960 = vmatpush.bf16.msra.mxu0 %v1359
    %1961 = vmatpush.bf16.msra.mxu0 %v1355
    %1962 = vmatpush.bf16.msra.mxu0 %v1351
    %1963 = vmatmul.bf16.gmra.mxu0 %v379
    %v1964 = vpop.f32.mrf.mxu0
    %v1965 = vadd.f32 %v1952, %v1964
    %v1966 = vpop.f32.mrf.mxu0
    %1967 = vdwg.mxu0
    %1968 = vmatpush.bf16.msra.mxu0 %v1411
    %1969 = vmatpush.bf16.msra.mxu0 %v1407
    %1970 = vmatpush.bf16.msra.mxu0 %v1403
    %1971 = vmatpush.bf16.msra.mxu0 %v1399
    %1972 = vmatpush.bf16.msra.mxu0 %v1395
    %1973 = vmatpush.bf16.msra.mxu0 %v1391
    %1974 = vmatpush.bf16.msra.mxu0 %v1387
    %1975 = vmatpush.bf16.msra.mxu0 %v1383
    %1976 = vmatmul.bf16.gmra.mxu0 %v380
    %v1977 = vpop.f32.mrf.mxu0
    %v1978 = vadd.f32 %v1965, %v1977
    %v1979 = vpop.f32.mrf.mxu0
    %1980 = vdwg.mxu0
    %1981 = vmatpush.bf16.msra.mxu0 %v1188
    %1982 = vmatpush.bf16.msra.mxu0 %v1184
    %1983 = vmatpush.bf16.msra.mxu0 %v1180
    %1984 = vmatpush.bf16.msra.mxu0 %v1176
    %1985 = vmatpush.bf16.msra.mxu0 %v1172
    %1986 = vmatpush.bf16.msra.mxu0 %v1168
    %1987 = vmatpush.bf16.msra.mxu0 %v1164
    %1988 = vmatpush.bf16.msra.mxu0 %v1160
    %1989 = vmatmul.bf16.gmra.mxu0 %v373
    %v1990 = vpop.f32.mrf.mxu0
    %v1991 = vadd.f32 %v356, %v1990
    %v1992 = vpop.f32.mrf.mxu0
    %1993 = vdwg.mxu0
    %1994 = vmatpush.bf16.msra.mxu0 %v1220
    %1995 = vmatpush.bf16.msra.mxu0 %v1216
    %1996 = vmatpush.bf16.msra.mxu0 %v1212
    %1997 = vmatpush.bf16.msra.mxu0 %v1208
    %1998 = vmatpush.bf16.msra.mxu0 %v1204
    %1999 = vmatpush.bf16.msra.mxu0 %v1200
    %2000 = vmatpush.bf16.msra.mxu0 %v1196
    %2001 = vmatpush.bf16.msra.mxu0 %v1192
    %2002 = vmatmul.bf16.gmra.mxu0 %v374
    %v2003 = vpop.f32.mrf.mxu0
    %v2004 = vadd.f32 %v1991, %v2003
    %v2005 = vpop.f32.mrf.mxu0
    %2006 = vdwg.mxu0
    %2007 = vmatpush.bf16.msra.mxu0 %v1252
    %2008 = vmatpush.bf16.msra.mxu0 %v1248
    %2009 = vmatpush.bf16.msra.mxu0 %v1244
    %2010 = vmatpush.bf16.msra.mxu0 %v1240
    %2011 = vmatpush.bf16.msra.mxu0 %v1236
    %2012 = vmatpush.bf16.msra.mxu0 %v1232
    %2013 = vmatpush.bf16.msra.mxu0 %v1228
    %2014 = vmatpush.bf16.msra.mxu0 %v1224
    %2015 = vmatmul.bf16.gmra.mxu0 %v375
    %v2016 = vpop.f32.mrf.mxu0
    %v2017 = vadd.f32 %v2004, %v2016
    %v2018 = vpop.f32.mrf.mxu0
    %2019 = vdwg.mxu0
    %2020 = vmatpush.bf16.msra.mxu0 %v1284
    %2021 = vmatpush.bf16.msra.mxu0 %v1280
    %2022 = vmatpush.bf16.msra.mxu0 %v1276
    %2023 = vmatpush.bf16.msra.mxu0 %v1272
    %2024 = vmatpush.bf16.msra.mxu0 %v1268
    %2025 = vmatpush.bf16.msra.mxu0 %v1264
    %2026 = vmatpush.bf16.msra.mxu0 %v1260
    %2027 = vmatpush.bf16.msra.mxu0 %v1256
    %2028 = vmatmul.bf16.gmra.mxu0 %v376
    %v2029 = vpop.f32.mrf.mxu0
    %v2030 = vadd.f32 %v2017, %v2029
    %v2031 = vpop.f32.mrf.mxu0
    %2032 = vdwg.mxu0
    %2033 = vmatpush.bf16.msra.mxu0 %v1316
    %2034 = vmatpush.bf16.msra.mxu0 %v1312
    %2035 = vmatpush.bf16.msra.mxu0 %v1308
    %2036 = vmatpush.bf16.msra.mxu0 %v1304
    %2037 = vmatpush.bf16.msra.mxu0 %v1300
    %2038 = vmatpush.bf16.msra.mxu0 %v1296
    %2039 = vmatpush.bf16.msra.mxu0 %v1292
    %2040 = vmatpush.bf16.msra.mxu0 %v1288
    %2041 = vmatmul.bf16.gmra.mxu0 %v377
    %v2042 = vpop.f32.mrf.mxu0
    %v2043 = vadd.f32 %v2030, %v2042
    %v2044 = vpop.f32.mrf.mxu0
    %2045 = vdwg.mxu0
    %2046 = vmatpush.bf16.msra.mxu0 %v1348
    %2047 = vmatpush.bf16.msra.mxu0 %v1344
    %2048 = vmatpush.bf16.msra.mxu0 %v1340
    %2049 = vmatpush.bf16.msra.mxu0 %v1336
    %2050 = vmatpush.bf16.msra.mxu0 %v1332
    %2051 = vmatpush.bf16.msra.mxu0 %v1328
    %2052 = vmatpush.bf16.msra.mxu0 %v1324
    %2053 = vmatpush.bf16.msra.mxu0 %v1320
    %2054 = vmatmul.bf16.gmra.mxu0 %v378
    %v2055 = vpop.f32.mrf.mxu0
    %v2056 = vadd.f32 %v2043, %v2055
    %v2057 = vpop.f32.mrf.mxu0
    %2058 = vdwg.mxu0
    %2059 = vmatpush.bf16.msra.mxu0 %v1380
    %2060 = vmatpush.bf16.msra.mxu0 %v1376
    %2061 = vmatpush.bf16.msra.mxu0 %v1372
    %2062 = vmatpush.bf16.msra.mxu0 %v1368
    %2063 = vmatpush.bf16.msra.mxu0 %v1364
    %2064 = vmatpush.bf16.msra.mxu0 %v1360
    %2065 = vmatpush.bf16.msra.mxu0 %v1356
    %2066 = vmatpush.bf16.msra.mxu0 %v1352
    %2067 = vmatmul.bf16.gmra.mxu0 %v379
    %v2068 = vpop.f32.mrf.mxu0
    %v2069 = vadd.f32 %v2056, %v2068
    %v2070 = vpop.f32.mrf.mxu0
    %2071 = vdwg.mxu0
    %2072 = vmatpush.bf16.msra.mxu0 %v1412
    %2073 = vmatpush.bf16.msra.mxu0 %v1408
    %2074 = vmatpush.bf16.msra.mxu0 %v1404
    %2075 = vmatpush.bf16.msra.mxu0 %v1400
    %2076 = vmatpush.bf16.msra.mxu0 %v1396
    %2077 = vmatpush.bf16.msra.mxu0 %v1392
    %2078 = vmatpush.bf16.msra.mxu0 %v1388
    %2079 = vmatpush.bf16.msra.mxu0 %v1384
    %2080 = vmatmul.bf16.gmra.mxu0 %v380
    %v2081 = vpop.f32.mrf.mxu0
    %v2082 = vadd.f32 %v2069, %v2081
    %v2083 = vpop.f32.mrf.mxu0
    %2084 = vdwg.mxu0
    %v2085 = vmax.f32 %v1770, 0.0
    %v2086 = vmax.f32 %v1874, 0.0
    %v2087 = vmax.f32 %v1978, 0.0
    %v2088 = vmax.f32 %v2082, 0.0
    %v2089 = vpack.c.bf16 %v2085, %v2085
    %v2090 = vpack.c.bf16 %v2086, %v2086
    %v2091 = vpack.c.bf16 %v2087, %v2087
    %v2092 = vpack.c.bf16 %v2088, %v2088
    %v2093 = vld [vmem:[#allocation4] sm:$0xff]
    %v2094 = vld [vmem:[#allocation4 + $0x8] sm:$0xff]
    %v2095 = vld [vmem:[#allocation4 + $0x10] sm:$0xff]
    %v2096 = vld [vmem:[#allocation4 + $0x18] sm:$0xff]
    %v2097 = vld [vmem:[#allocation4 + $0x20] sm:$0xff]
    %v2098 = vld [vmem:[#allocation4 + $0x28] sm:$0xff]
    %v2099 = vld [vmem:[#allocation4 + $0x30] sm:$0xff]
    %v2100 = vld [vmem:[#allocation4 + $0x38] sm:$0xff]
    %v2101 = vld [vmem:[#allocation4 + $0x40] sm:$0xff]
    %v2102 = vld [vmem:[#allocation4 + $0x48] sm:$0xff]
    %v2103 = vld [vmem:[#allocation4 + $0x50] sm:$0xff]
    %v2104 = vld [vmem:[#allocation4 + $0x58] sm:$0xff]
    %v2105 = vld [vmem:[#allocation4 + $0x60] sm:$0xff]
    %v2106 = vld [vmem:[#allocation4 + $0x68] sm:$0xff]
    %v2107 = vld [vmem:[#allocation4 + $0x70] sm:$0xff]
    %v2108 = vld [vmem:[#allocation4 + $0x78] sm:$0xff]
    %v2109 = vld [vmem:[#allocation4 + $0x80] sm:$0xff]
    %v2110 = vld [vmem:[#allocation4 + $0x88] sm:$0xff]
    %v2111 = vld [vmem:[#allocation4 + $0x90] sm:$0xff]
    %v2112 = vld [vmem:[#allocation4 + $0x98] sm:$0xff]
    %v2113 = vld [vmem:[#allocation4 + $0xa0] sm:$0xff]
    %v2114 = vld [vmem:[#allocation4 + $0xa8] sm:$0xff]
    %v2115 = vld [vmem:[#allocation4 + $0xb0] sm:$0xff]
    %v2116 = vld [vmem:[#allocation4 + $0xb8] sm:$0xff]
    %v2117 = vld [vmem:[#allocation4 + $0xc0] sm:$0xff]
    %v2118 = vld [vmem:[#allocation4 + $0xc8] sm:$0xff]
    %v2119 = vld [vmem:[#allocation4 + $0xd0] sm:$0xff]
    %v2120 = vld [vmem:[#allocation4 + $0xd8] sm:$0xff]
    %v2121 = vld [vmem:[#allocation4 + $0xe0] sm:$0xff]
    %v2122 = vld [vmem:[#allocation4 + $0xe8] sm:$0xff]
    %v2123 = vld [vmem:[#allocation4 + $0xf0] sm:$0xff]
    %v2124 = vld [vmem:[#allocation4 + $0xf8] sm:$0xff]
    %v2125 = vld [vmem:[#allocation4 + $0x100] sm:$0xff]
    %v2126 = vld [vmem:[#allocation4 + $0x108] sm:$0xff]
    %v2127 = vld [vmem:[#allocation4 + $0x110] sm:$0xff]
    %v2128 = vld [vmem:[#allocation4 + $0x118] sm:$0xff]
    %v2129 = vld [vmem:[#allocation4 + $0x120] sm:$0xff]
    %v2130 = vld [vmem:[#allocation4 + $0x128] sm:$0xff]
    %v2131 = vld [vmem:[#allocation4 + $0x130] sm:$0xff]
    %v2132 = vld [vmem:[#allocation4 + $0x138] sm:$0xff]
    %v2133 = vld [vmem:[#allocation4 + $0x140] sm:$0xff]
    %v2134 = vld [vmem:[#allocation4 + $0x148] sm:$0xff]
    %v2135 = vld [vmem:[#allocation4 + $0x150] sm:$0xff]
    %v2136 = vld [vmem:[#allocation4 + $0x158] sm:$0xff]
    %v2137 = vld [vmem:[#allocation4 + $0x160] sm:$0xff]
    %v2138 = vld [vmem:[#allocation4 + $0x168] sm:$0xff]
    %v2139 = vld [vmem:[#allocation4 + $0x170] sm:$0xff]
    %v2140 = vld [vmem:[#allocation4 + $0x178] sm:$0xff]
    %v2141 = vld [vmem:[#allocation4 + $0x180] sm:$0xff]
    %v2142 = vld [vmem:[#allocation4 + $0x188] sm:$0xff]
    %v2143 = vld [vmem:[#allocation4 + $0x190] sm:$0xff]
    %v2144 = vld [vmem:[#allocation4 + $0x198] sm:$0xff]
    %v2145 = vld [vmem:[#allocation4 + $0x1a0] sm:$0xff]
    %v2146 = vld [vmem:[#allocation4 + $0x1a8] sm:$0xff]
    %v2147 = vld [vmem:[#allocation4 + $0x1b0] sm:$0xff]
    %v2148 = vld [vmem:[#allocation4 + $0x1b8] sm:$0xff]
    %v2149 = vld [vmem:[#allocation4 + $0x1c0] sm:$0xff]
    %v2150 = vld [vmem:[#allocation4 + $0x1c8] sm:$0xff]
    %v2151 = vld [vmem:[#allocation4 + $0x1d0] sm:$0xff]
    %v2152 = vld [vmem:[#allocation4 + $0x1d8] sm:$0xff]
    %v2153 = vld [vmem:[#allocation4 + $0x1e0] sm:$0xff]
    %v2154 = vld [vmem:[#allocation4 + $0x1e8] sm:$0xff]
    %v2155 = vld [vmem:[#allocation4 + $0x1f0] sm:$0xff]
    %v2156 = vld [vmem:[#allocation4 + $0x1f8] sm:$0xff]
    %v2157 = vld [vmem:[%s4] sm:$0x3]
    %v2159 = vperm.slane %v2157, 0
    %v2160 = vperm.slane %v2157, 1
    %v2227 = vunpack.c.l.b16 %v2093
    %v2228 = vunpack.c.h.b16 %v2093
    %v2229 = vunpack.c.l.b16 %v2094
    %v2230 = vunpack.c.h.b16 %v2094
    %v2231 = vunpack.c.l.b16 %v2095
    %v2232 = vunpack.c.h.b16 %v2095
    %v2233 = vunpack.c.l.b16 %v2096
    %v2234 = vunpack.c.h.b16 %v2096
    %v2235 = vunpack.c.l.b16 %v2097
    %v2236 = vunpack.c.h.b16 %v2097
    %v2237 = vunpack.c.l.b16 %v2098
    %v2238 = vunpack.c.h.b16 %v2098
    %v2239 = vunpack.c.l.b16 %v2099
    %v2240 = vunpack.c.h.b16 %v2099
    %v2241 = vunpack.c.l.b16 %v2100
    %v2242 = vunpack.c.h.b16 %v2100
    %v2243 = vunpack.c.l.b16 %v2101
    %v2244 = vunpack.c.h.b16 %v2101
    %v2245 = vunpack.c.l.b16 %v2102
    %v2246 = vunpack.c.h.b16 %v2102
    %v2247 = vunpack.c.l.b16 %v2103
    %v2248 = vunpack.c.h.b16 %v2103
    %v2249 = vunpack.c.l.b16 %v2104
    %v2250 = vunpack.c.h.b16 %v2104
    %v2251 = vunpack.c.l.b16 %v2105
    %v2252 = vunpack.c.h.b16 %v2105
    %v2253 = vunpack.c.l.b16 %v2106
    %v2254 = vunpack.c.h.b16 %v2106
    %v2255 = vunpack.c.l.b16 %v2107
    %v2256 = vunpack.c.h.b16 %v2107
    %v2257 = vunpack.c.l.b16 %v2108
    %v2258 = vunpack.c.h.b16 %v2108
    %v2259 = vunpack.c.l.b16 %v2109
    %v2260 = vunpack.c.h.b16 %v2109
    %v2261 = vunpack.c.l.b16 %v2110
    %v2262 = vunpack.c.h.b16 %v2110
    %v2263 = vunpack.c.l.b16 %v2111
    %v2264 = vunpack.c.h.b16 %v2111
    %v2265 = vunpack.c.l.b16 %v2112
    %v2266 = vunpack.c.h.b16 %v2112
    %v2267 = vunpack.c.l.b16 %v2113
    %v2268 = vunpack.c.h.b16 %v2113
    %v2269 = vunpack.c.l.b16 %v2114
    %v2270 = vunpack.c.h.b16 %v2114
    %v2271 = vunpack.c.l.b16 %v2115
    %v2272 = vunpack.c.h.b16 %v2115
    %v2273 = vunpack.c.l.b16 %v2116
    %v2274 = vunpack.c.h.b16 %v2116
    %v2275 = vunpack.c.l.b16 %v2117
    %v2276 = vunpack.c.h.b16 %v2117
    %v2277 = vunpack.c.l.b16 %v2118
    %v2278 = vunpack.c.h.b16 %v2118
    %v2279 = vunpack.c.l.b16 %v2119
    %v2280 = vunpack.c.h.b16 %v2119
    %v2281 = vunpack.c.l.b16 %v2120
    %v2282 = vunpack.c.h.b16 %v2120
    %v2283 = vunpack.c.l.b16 %v2121
    %v2284 = vunpack.c.h.b16 %v2121
    %v2285 = vunpack.c.l.b16 %v2122
    %v2286 = vunpack.c.h.b16 %v2122
    %v2287 = vunpack.c.l.b16 %v2123
    %v2288 = vunpack.c.h.b16 %v2123
    %v2289 = vunpack.c.l.b16 %v2124
    %v2290 = vunpack.c.h.b16 %v2124
    %v2291 = vunpack.c.l.b16 %v2125
    %v2292 = vunpack.c.h.b16 %v2125
    %v2293 = vunpack.c.l.b16 %v2126
    %v2294 = vunpack.c.h.b16 %v2126
    %v2295 = vunpack.c.l.b16 %v2127
    %v2296 = vunpack.c.h.b16 %v2127
    %v2297 = vunpack.c.l.b16 %v2128
    %v2298 = vunpack.c.h.b16 %v2128
    %v2299 = vunpack.c.l.b16 %v2129
    %v2300 = vunpack.c.h.b16 %v2129
    %v2301 = vunpack.c.l.b16 %v2130
    %v2302 = vunpack.c.h.b16 %v2130
    %v2303 = vunpack.c.l.b16 %v2131
    %v2304 = vunpack.c.h.b16 %v2131
    %v2305 = vunpack.c.l.b16 %v2132
    %v2306 = vunpack.c.h.b16 %v2132
    %v2307 = vunpack.c.l.b16 %v2133
    %v2308 = vunpack.c.h.b16 %v2133
    %v2309 = vunpack.c.l.b16 %v2134
    %v2310 = vunpack.c.h.b16 %v2134
    %v2311 = vunpack.c.l.b16 %v2135
    %v2312 = vunpack.c.h.b16 %v2135
    %v2313 = vunpack.c.l.b16 %v2136
    %v2314 = vunpack.c.h.b16 %v2136
    %v2315 = vunpack.c.l.b16 %v2137
    %v2316 = vunpack.c.h.b16 %v2137
    %v2317 = vunpack.c.l.b16 %v2138
    %v2318 = vunpack.c.h.b16 %v2138
    %v2319 = vunpack.c.l.b16 %v2139
    %v2320 = vunpack.c.h.b16 %v2139
    %v2321 = vunpack.c.l.b16 %v2140
    %v2322 = vunpack.c.h.b16 %v2140
    %v2323 = vunpack.c.l.b16 %v2141
    %v2324 = vunpack.c.h.b16 %v2141
    %v2325 = vunpack.c.l.b16 %v2142
    %v2326 = vunpack.c.h.b16 %v2142
    %v2327 = vunpack.c.l.b16 %v2143
    %v2328 = vunpack.c.h.b16 %v2143
    %v2329 = vunpack.c.l.b16 %v2144
    %v2330 = vunpack.c.h.b16 %v2144
    %v2331 = vunpack.c.l.b16 %v2145
    %v2332 = vunpack.c.h.b16 %v2145
    %v2333 = vunpack.c.l.b16 %v2146
    %v2334 = vunpack.c.h.b16 %v2146
    %v2335 = vunpack.c.l.b16 %v2147
    %v2336 = vunpack.c.h.b16 %v2147
    %v2337 = vunpack.c.l.b16 %v2148
    %v2338 = vunpack.c.h.b16 %v2148
    %v2339 = vunpack.c.l.b16 %v2149
    %v2340 = vunpack.c.h.b16 %v2149
    %v2341 = vunpack.c.l.b16 %v2150
    %v2342 = vunpack.c.h.b16 %v2150
    %v2343 = vunpack.c.l.b16 %v2151
    %v2344 = vunpack.c.h.b16 %v2151
    %v2345 = vunpack.c.l.b16 %v2152
    %v2346 = vunpack.c.h.b16 %v2152
    %v2347 = vunpack.c.l.b16 %v2153
    %v2348 = vunpack.c.h.b16 %v2153
    %v2349 = vunpack.c.l.b16 %v2154
    %v2350 = vunpack.c.h.b16 %v2154
    %v2351 = vunpack.c.l.b16 %v2155
    %v2352 = vunpack.c.h.b16 %v2155
    %v2353 = vunpack.c.l.b16 %v2156
    %v2354 = vunpack.c.h.b16 %v2156
    %v2355 = vpack.c.b16 %v2229, %v2227
    %v2356 = vpack.c.b16 %v2230, %v2228
    %v2357 = vpack.c.b16 %v2233, %v2231
    %v2358 = vpack.c.b16 %v2234, %v2232
    %v2359 = vpack.c.b16 %v2237, %v2235
    %v2360 = vpack.c.b16 %v2238, %v2236
    %v2361 = vpack.c.b16 %v2241, %v2239
    %v2362 = vpack.c.b16 %v2242, %v2240
    %v2363 = vpack.c.b16 %v2245, %v2243
    %v2364 = vpack.c.b16 %v2246, %v2244
    %v2365 = vpack.c.b16 %v2249, %v2247
    %v2366 = vpack.c.b16 %v2250, %v2248
    %v2367 = vpack.c.b16 %v2253, %v2251
    %v2368 = vpack.c.b16 %v2254, %v2252
    %v2369 = vpack.c.b16 %v2257, %v2255
    %v2370 = vpack.c.b16 %v2258, %v2256
    %v2371 = vpack.c.b16 %v2261, %v2259
    %v2372 = vpack.c.b16 %v2262, %v2260
    %v2373 = vpack.c.b16 %v2265, %v2263
    %v2374 = vpack.c.b16 %v2266, %v2264
    %v2375 = vpack.c.b16 %v2269, %v2267
    %v2376 = vpack.c.b16 %v2270, %v2268
    %v2377 = vpack.c.b16 %v2273, %v2271
    %v2378 = vpack.c.b16 %v2274, %v2272
    %v2379 = vpack.c.b16 %v2277, %v2275
    %v2380 = vpack.c.b16 %v2278, %v2276
    %v2381 = vpack.c.b16 %v2281, %v2279
    %v2382 = vpack.c.b16 %v2282, %v2280
    %v2383 = vpack.c.b16 %v2285, %v2283
    %v2384 = vpack.c.b16 %v2286, %v2284
    %v2385 = vpack.c.b16 %v2289, %v2287
    %v2386 = vpack.c.b16 %v2290, %v2288
    %v2387 = vpack.c.b16 %v2293, %v2291
    %v2388 = vpack.c.b16 %v2294, %v2292
    %v2389 = vpack.c.b16 %v2297, %v2295
    %v2390 = vpack.c.b16 %v2298, %v2296
    %v2391 = vpack.c.b16 %v2301, %v2299
    %v2392 = vpack.c.b16 %v2302, %v2300
    %v2393 = vpack.c.b16 %v2305, %v2303
    %v2394 = vpack.c.b16 %v2306, %v2304
    %v2395 = vpack.c.b16 %v2309, %v2307
    %v2396 = vpack.c.b16 %v2310, %v2308
    %v2397 = vpack.c.b16 %v2313, %v2311
    %v2398 = vpack.c.b16 %v2314, %v2312
    %v2399 = vpack.c.b16 %v2317, %v2315
    %v2400 = vpack.c.b16 %v2318, %v2316
    %v2401 = vpack.c.b16 %v2321, %v2319
    %v2402 = vpack.c.b16 %v2322, %v2320
    %v2403 = vpack.c.b16 %v2325, %v2323
    %v2404 = vpack.c.b16 %v2326, %v2324
    %v2405 = vpack.c.b16 %v2329, %v2327
    %v2406 = vpack.c.b16 %v2330, %v2328
    %v2407 = vpack.c.b16 %v2333, %v2331
    %v2408 = vpack.c.b16 %v2334, %v2332
    %v2409 = vpack.c.b16 %v2337, %v2335
    %v2410 = vpack.c.b16 %v2338, %v2336
    %v2411 = vpack.c.b16 %v2341, %v2339
    %v2412 = vpack.c.b16 %v2342, %v2340
    %v2413 = vpack.c.b16 %v2345, %v2343
    %v2414 = vpack.c.b16 %v2346, %v2344
    %v2415 = vpack.c.b16 %v2349, %v2347
    %v2416 = vpack.c.b16 %v2350, %v2348
    %v2417 = vpack.c.b16 %v2353, %v2351
    %v2418 = vpack.c.b16 %v2354, %v2352
    %2483 = vmatpush.bf16.msra.mxu0 %v2369
    %2484 = vmatpush.bf16.msra.mxu0 %v2367
    %2485 = vmatpush.bf16.msra.mxu0 %v2365
    %2486 = vmatpush.bf16.msra.mxu0 %v2363
    %2487 = vmatpush.bf16.msra.mxu0 %v2361
    %2488 = vmatpush.bf16.msra.mxu0 %v2359
    %2489 = vmatpush.bf16.msra.mxu0 %v2357
    %2490 = vmatpush.bf16.msra.mxu0 %v2355
    %2491 = vmatmul.bf16.gmra.mxu0 %v2089
    %v2492 = vpop.f32.mrf.mxu0
    %v2493 = vadd.f32 %v2159, %v2492
    %v2494 = vpop.f32.mrf.mxu0
    %2495 = vdwg.mxu0
    %2496 = vmatpush.bf16.msra.mxu0 %v2385
    %2497 = vmatpush.bf16.msra.mxu0 %v2383
    %2498 = vmatpush.bf16.msra.mxu0 %v2381
    %2499 = vmatpush.bf16.msra.mxu0 %v2379
    %2500 = vmatpush.bf16.msra.mxu0 %v2377
    %2501 = vmatpush.bf16.msra.mxu0 %v2375
    %2502 = vmatpush.bf16.msra.mxu0 %v2373
    %2503 = vmatpush.bf16.msra.mxu0 %v2371
    %2504 = vmatmul.bf16.gmra.mxu0 %v2090
    %v2505 = vpop.f32.mrf.mxu0
    %v2506 = vadd.f32 %v2493, %v2505
    %v2507 = vpop.f32.mrf.mxu0
    %2508 = vdwg.mxu0
    %2509 = vmatpush.bf16.msra.mxu0 %v2401
    %2510 = vmatpush.bf16.msra.mxu0 %v2399
    %2511 = vmatpush.bf16.msra.mxu0 %v2397
    %2512 = vmatpush.bf16.msra.mxu0 %v2395
    %2513 = vmatpush.bf16.msra.mxu0 %v2393
    %2514 = vmatpush.bf16.msra.mxu0 %v2391
    %2515 = vmatpush.bf16.msra.mxu0 %v2389
    %2516 = vmatpush.bf16.msra.mxu0 %v2387
    %2517 = vmatmul.bf16.gmra.mxu0 %v2091
    %v2518 = vpop.f32.mrf.mxu0
    %v2519 = vadd.f32 %v2506, %v2518
    %v2520 = vpop.f32.mrf.mxu0
    %2521 = vdwg.mxu0
    %2522 = vmatpush.bf16.msra.mxu0 %v2417
    %2523 = vmatpush.bf16.msra.mxu0 %v2415
    %2524 = vmatpush.bf16.msra.mxu0 %v2413
    %2525 = vmatpush.bf16.msra.mxu0 %v2411
    %2526 = vmatpush.bf16.msra.mxu0 %v2409
    %2527 = vmatpush.bf16.msra.mxu0 %v2407
    %2528 = vmatpush.bf16.msra.mxu0 %v2405
    %2529 = vmatpush.bf16.msra.mxu0 %v2403
    %2530 = vmatmul.bf16.gmra.mxu0 %v2092
    %v2531 = vpop.f32.mrf.mxu0
    %v2532 = vadd.f32 %v2519, %v2531
    %v2533 = vpop.f32.mrf.mxu0
    %2534 = vdwg.mxu0
    %2535 = vmatpush.bf16.msra.mxu0 %v2370
    %2536 = vmatpush.bf16.msra.mxu0 %v2368
    %2537 = vmatpush.bf16.msra.mxu0 %v2366
    %2538 = vmatpush.bf16.msra.mxu0 %v2364
    %2539 = vmatpush.bf16.msra.mxu0 %v2362
    %2540 = vmatpush.bf16.msra.mxu0 %v2360
    %2541 = vmatpush.bf16.msra.mxu0 %v2358
    %2542 = vmatpush.bf16.msra.mxu0 %v2356
    %2543 = vmatmul.bf16.gmra.mxu0 %v2089
    %v2544 = vpop.f32.mrf.mxu0
    %v2545 = vadd.f32 %v2160, %v2544
    %v2546 = vpop.f32.mrf.mxu0
    %2547 = vdwg.mxu0
    %2548 = vmatpush.bf16.msra.mxu0 %v2386
    %2549 = vmatpush.bf16.msra.mxu0 %v2384
    %2550 = vmatpush.bf16.msra.mxu0 %v2382
    %2551 = vmatpush.bf16.msra.mxu0 %v2380
    %2552 = vmatpush.bf16.msra.mxu0 %v2378
    %2553 = vmatpush.bf16.msra.mxu0 %v2376
    %2554 = vmatpush.bf16.msra.mxu0 %v2374
    %2555 = vmatpush.bf16.msra.mxu0 %v2372
    %2556 = vmatmul.bf16.gmra.mxu0 %v2090
    %v2557 = vpop.f32.mrf.mxu0
    %v2558 = vadd.f32 %v2545, %v2557
    %v2559 = vpop.f32.mrf.mxu0
    %2560 = vdwg.mxu0
    %2561 = vmatpush.bf16.msra.mxu0 %v2402
    %2562 = vmatpush.bf16.msra.mxu0 %v2400
    %2563 = vmatpush.bf16.msra.mxu0 %v2398
    %2564 = vmatpush.bf16.msra.mxu0 %v2396
    %2565 = vmatpush.bf16.msra.mxu0 %v2394
    %2566 = vmatpush.bf16.msra.mxu0 %v2392
    %2567 = vmatpush.bf16.msra.mxu0 %v2390
    %2568 = vmatpush.bf16.msra.mxu0 %v2388
    %2569 = vmatmul.bf16.gmra.mxu0 %v2091
    %v2570 = vpop.f32.mrf.mxu0
    %v2571 = vadd.f32 %v2558, %v2570
    %v2572 = vpop.f32.mrf.mxu0
    %2573 = vdwg.mxu0
    %2574 = vmatpush.bf16.msra.mxu0 %v2418
    %2575 = vmatpush.bf16.msra.mxu0 %v2416
    %2576 = vmatpush.bf16.msra.mxu0 %v2414
    %2577 = vmatpush.bf16.msra.mxu0 %v2412
    %2578 = vmatpush.bf16.msra.mxu0 %v2410
    %2579 = vmatpush.bf16.msra.mxu0 %v2408
    %2580 = vmatpush.bf16.msra.mxu0 %v2406
    %2581 = vmatpush.bf16.msra.mxu0 %v2404
    %2582 = vmatmul.bf16.gmra.mxu0 %v2092
    %v2583 = vpop.f32.mrf.mxu0
    %v2584 = vadd.f32 %v2571, %v2583
    %v2585 = vpop.f32.mrf.mxu0
    %2586 = vdwg.mxu0
    %v2587 = vmax.f32 %v2532, 0.0
    %v2588 = vmax.f32 %v2584, 0.0
    %v2589 = vpack.c.bf16 %v2587, %v2587
    %v2590 = vpack.c.bf16 %v2588, %v2588
    %v2591 = vld [vmem:[%s5] sm:$0xf]
    %v2592 = vld [vmem:[%s5 + $0x4] sm:$0xf]
    %v2593 = vld [vmem:[%s5 + $0x8] sm:$0xf]
    %v2594 = vld [vmem:[%s5 + $0xc] sm:$0xf]
    %v2595 = vld [vmem:[%s5 + $0x10] sm:$0xf]
    %v2596 = vld [vmem:[%s5 + $0x14] sm:$0xf]
    %v2597 = vld [vmem:[%s5 + $0x18] sm:$0xf]
    %v2598 = vld [vmem:[%s5 + $0x1c] sm:$0xf]
    %v2599 = vld [vmem:[%s5 + $0x20] sm:$0xf]
    %v2600 = vld [vmem:[%s5 + $0x24] sm:$0xf]
    %v2601 = vld [vmem:[%s5 + $0x28] sm:$0xf]
    %v2602 = vld [vmem:[%s5 + $0x2c] sm:$0xf]
    %v2603 = vld [vmem:[%s5 + $0x30] sm:$0xf]
    %v2604 = vld [vmem:[%s5 + $0x34] sm:$0xf]
    %v2605 = vld [vmem:[%s5 + $0x38] sm:$0xf]
    %v2606 = vld [vmem:[%s5 + $0x3c] sm:$0xf]
    %v2607 = vld [vmem:[%s5 + $0x40] sm:$0xf]
    %v2608 = vld [vmem:[%s5 + $0x44] sm:$0xf]
    %v2609 = vld [vmem:[%s5 + $0x48] sm:$0xf]
    %v2610 = vld [vmem:[%s5 + $0x4c] sm:$0xf]
    %v2611 = vld [vmem:[%s5 + $0x50] sm:$0xf]
    %v2612 = vld [vmem:[%s5 + $0x54] sm:$0xf]
    %v2613 = vld [vmem:[%s5 + $0x58] sm:$0xf]
    %v2614 = vld [vmem:[%s5 + $0x5c] sm:$0xf]
    %v2615 = vld [vmem:[%s5 + $0x60] sm:$0xf]
    %v2616 = vld [vmem:[%s5 + $0x64] sm:$0xf]
    %v2617 = vld [vmem:[%s5 + $0x68] sm:$0xf]
    %v2618 = vld [vmem:[%s5 + $0x6c] sm:$0xf]
    %v2619 = vld [vmem:[%s5 + $0x70] sm:$0xf]
    %v2620 = vld [vmem:[%s5 + $0x74] sm:$0xf]
    %v2621 = vld [vmem:[%s5 + $0x78] sm:$0xf]
    %v2622 = vld [vmem:[%s5 + $0x7c] sm:$0xf]
    %v2623 = vld [vmem:[%s6] sm:$0x1]
    %v2625 = vperm.slane %v2623, 0
    %v2659 = vunpack.c.l.b16 %v2591
    %v2660 = vunpack.c.l.b16 %v2592
    %v2661 = vunpack.c.l.b16 %v2593
    %v2662 = vunpack.c.l.b16 %v2594
    %v2663 = vunpack.c.l.b16 %v2595
    %v2664 = vunpack.c.l.b16 %v2596
    %v2665 = vunpack.c.l.b16 %v2597
    %v2666 = vunpack.c.l.b16 %v2598
    %v2667 = vunpack.c.l.b16 %v2599
    %v2668 = vunpack.c.l.b16 %v2600
    %v2669 = vunpack.c.l.b16 %v2601
    %v2670 = vunpack.c.l.b16 %v2602
    %v2671 = vunpack.c.l.b16 %v2603
    %v2672 = vunpack.c.l.b16 %v2604
    %v2673 = vunpack.c.l.b16 %v2605
    %v2674 = vunpack.c.l.b16 %v2606
    %v2675 = vunpack.c.l.b16 %v2607
    %v2676 = vunpack.c.l.b16 %v2608
    %v2677 = vunpack.c.l.b16 %v2609
    %v2678 = vunpack.c.l.b16 %v2610
    %v2679 = vunpack.c.l.b16 %v2611
    %v2680 = vunpack.c.l.b16 %v2612
    %v2681 = vunpack.c.l.b16 %v2613
    %v2682 = vunpack.c.l.b16 %v2614
    %v2683 = vunpack.c.l.b16 %v2615
    %v2684 = vunpack.c.l.b16 %v2616
    %v2685 = vunpack.c.l.b16 %v2617
    %v2686 = vunpack.c.l.b16 %v2618
    %v2687 = vunpack.c.l.b16 %v2619
    %v2688 = vunpack.c.l.b16 %v2620
    %v2689 = vunpack.c.l.b16 %v2621
    %v2690 = vunpack.c.l.b16 %v2622
    %v2691 = vpack.c.b16 %v2660, %v2659
    %v2692 = vpack.c.b16 %v2662, %v2661
    %v2693 = vpack.c.b16 %v2664, %v2663
    %v2694 = vpack.c.b16 %v2666, %v2665
    %v2695 = vpack.c.b16 %v2668, %v2667
    %v2696 = vpack.c.b16 %v2670, %v2669
    %v2697 = vpack.c.b16 %v2672, %v2671
    %v2698 = vpack.c.b16 %v2674, %v2673
    %v2699 = vpack.c.b16 %v2676, %v2675
    %v2700 = vpack.c.b16 %v2678, %v2677
    %v2701 = vpack.c.b16 %v2680, %v2679
    %v2702 = vpack.c.b16 %v2682, %v2681
    %v2703 = vpack.c.b16 %v2684, %v2683
    %v2704 = vpack.c.b16 %v2686, %v2685
    %v2705 = vpack.c.b16 %v2688, %v2687
    %v2706 = vpack.c.b16 %v2690, %v2689
    %2723 = vmatpush.bf16.msra.mxu0 %v2698
    %2724 = vmatpush.bf16.msra.mxu0 %v2697
    %2725 = vmatpush.bf16.msra.mxu0 %v2696
    %2726 = vmatpush.bf16.msra.mxu0 %v2695
    %2727 = vmatpush.bf16.msra.mxu0 %v2694
    %2728 = vmatpush.bf16.msra.mxu0 %v2693
    %2729 = vmatpush.bf16.msra.mxu0 %v2692
    %2730 = vmatpush.bf16.msra.mxu0 %v2691
    %2731 = vmatmul.bf16.gmra.mxu0 %v2589
    %v2732 = vpop.f32.mrf.mxu0
    %v2733 = vadd.f32 %v2625, %v2732
    %v2734 = vpop.f32.mrf.mxu0
    %2735 = vdwg.mxu0
    %2736 = vmatpush.bf16.msra.mxu0 %v2706
    %2737 = vmatpush.bf16.msra.mxu0 %v2705
    %2738 = vmatpush.bf16.msra.mxu0 %v2704
    %2739 = vmatpush.bf16.msra.mxu0 %v2703
    %2740 = vmatpush.bf16.msra.mxu0 %v2702
    %2741 = vmatpush.bf16.msra.mxu0 %v2701
    %2742 = vmatpush.bf16.msra.mxu0 %v2700
    %2743 = vmatpush.bf16.msra.mxu0 %v2699
    %2744 = vmatmul.bf16.gmra.mxu0 %v2590
    %v2745 = vpop.f32.mrf.mxu0
    %v2746 = vadd.f32 %v2733, %v2745
    %v2747 = vpop.f32.mrf.mxu0
    %2748 = vdwg.mxu0
    %v2749 = vmax.f32 %v2746, 0.0
    %v2750 = vpack.c.bf16 %v2749, %v2749
    %v2751 = vld [vmem:[%s7] sm:$0xf]
    %v2752 = vld [vmem:[%s7 + $0x4] sm:$0xf]
    %v2753 = vld [vmem:[%s7 + $0x8] sm:$0xf]
    %v2754 = vld [vmem:[%s7 + $0xc] sm:$0xf]
    %v2755 = vld [vmem:[%s7 + $0x10] sm:$0xf]
    %v2756 = vld [vmem:[%s7 + $0x14] sm:$0xf]
    %v2757 = vld [vmem:[%s7 + $0x18] sm:$0xf]
    %v2758 = vld [vmem:[%s7 + $0x1c] sm:$0xf]
    %v2759 = vld [vmem:[%s7 + $0x20] sm:$0xf]
    %v2760 = vld [vmem:[%s7 + $0x24] sm:$0xf]
    %v2761 = vld [vmem:[%s7 + $0x28] sm:$0xf]
    %v2762 = vld [vmem:[%s7 + $0x2c] sm:$0xf]
    %v2763 = vld [vmem:[%s7 + $0x30] sm:$0xf]
    %v2764 = vld [vmem:[%s7 + $0x34] sm:$0xf]
    %v2765 = vld [vmem:[%s7 + $0x38] sm:$0xf]
    %v2766 = vld [vmem:[%s7 + $0x3c] sm:$0xf]
    %v2767 = vld [vmem:[%s8] sm:$0x1]
    %v2769 = vperm.slane %v2767, 0
    %v2787 = vunpack.c.l.b16 %v2751
    %v2788 = vunpack.c.l.b16 %v2752
    %v2789 = vunpack.c.l.b16 %v2753
    %v2790 = vunpack.c.l.b16 %v2754
    %v2791 = vunpack.c.l.b16 %v2755
    %v2792 = vunpack.c.l.b16 %v2756
    %v2793 = vunpack.c.l.b16 %v2757
    %v2794 = vunpack.c.l.b16 %v2758
    %v2795 = vunpack.c.l.b16 %v2759
    %v2796 = vunpack.c.l.b16 %v2760
    %v2797 = vunpack.c.l.b16 %v2761
    %v2798 = vunpack.c.l.b16 %v2762
    %v2799 = vunpack.c.l.b16 %v2763
    %v2800 = vunpack.c.l.b16 %v2764
    %v2801 = vunpack.c.l.b16 %v2765
    %v2802 = vunpack.c.l.b16 %v2766
    %v2803 = vpack.c.b16 %v2788, %v2787
    %v2804 = vpack.c.b16 %v2790, %v2789
    %v2805 = vpack.c.b16 %v2792, %v2791
    %v2806 = vpack.c.b16 %v2794, %v2793
    %v2807 = vpack.c.b16 %v2796, %v2795
    %v2808 = vpack.c.b16 %v2798, %v2797
    %v2809 = vpack.c.b16 %v2800, %v2799
    %v2810 = vpack.c.b16 %v2802, %v2801
    %2819 = vmatpush.bf16.msra.mxu0 %v2810
    %2820 = vmatpush.bf16.msra.mxu0 %v2809
    %2821 = vmatpush.bf16.msra.mxu0 %v2808
    %2822 = vmatpush.bf16.msra.mxu0 %v2807
    %2823 = vmatpush.bf16.msra.mxu0 %v2806
    %2824 = vmatpush.bf16.msra.mxu0 %v2805
    %2825 = vmatpush.bf16.msra.mxu0 %v2804
    %2826 = vmatpush.bf16.msra.mxu0 %v2803
    %2827 = vmatmul.bf16.gmra.mxu0 %v2750
    %v2828 = vpop.f32.mrf.mxu0
    %v2829 = vadd.f32 %v2769, %v2828
    %v2830 = vpop.f32.mrf.mxu0
    %2831 = vdwg.mxu0
    %v2832 = vmax.f32 %v2829, 0.0
    %v2833 = vpack.c.bf16 %v2832, %v2832
    %v2834 = vld [vmem:[%s9] sm:$0xf]
    %v2835 = vld [vmem:[%s9 + $0x4] sm:$0xf]
    %v2836 = vld [vmem:[%s9 + $0x8] sm:$0xf]
    %v2837 = vld [vmem:[%s9 + $0xc] sm:$0xf]
    %v2838 = vld [vmem:[%s9 + $0x10] sm:$0xf]
    %v2839 = vld [vmem:[%s9 + $0x14] sm:$0xf]
    %v2840 = vld [vmem:[%s9 + $0x18] sm:$0xf]
    %v2841 = vld [vmem:[%s9 + $0x1c] sm:$0xf]
    %v2842 = vld [vmem:[%s9 + $0x20] sm:$0xf]
    %v2843 = vld [vmem:[%s9 + $0x24] sm:$0xf]
    %v2844 = vld [vmem:[%s9 + $0x28] sm:$0xf]
    %v2845 = vld [vmem:[%s9 + $0x2c] sm:$0xf]
    %v2846 = vld [vmem:[%s9 + $0x30] sm:$0xf]
    %v2847 = vld [vmem:[%s9 + $0x34] sm:$0xf]
    %v2848 = vld [vmem:[%s9 + $0x38] sm:$0xf]
    %v2849 = vld [vmem:[%s9 + $0x3c] sm:$0xf]
    %v2850 = vld [vmem:[%s10] sm:$0x1]
    %v2852 = vperm.slane %v2850, 0
    %v2870 = vunpack.c.l.b16 %v2834
    %v2871 = vunpack.c.l.b16 %v2835
    %v2872 = vunpack.c.l.b16 %v2836
    %v2873 = vunpack.c.l.b16 %v2837
    %v2874 = vunpack.c.l.b16 %v2838
    %v2875 = vunpack.c.l.b16 %v2839
    %v2876 = vunpack.c.l.b16 %v2840
    %v2877 = vunpack.c.l.b16 %v2841
    %v2878 = vunpack.c.l.b16 %v2842
    %v2879 = vunpack.c.l.b16 %v2843
    %v2880 = vunpack.c.l.b16 %v2844
    %v2881 = vunpack.c.l.b16 %v2845
    %v2882 = vunpack.c.l.b16 %v2846
    %v2883 = vunpack.c.l.b16 %v2847
    %v2884 = vunpack.c.l.b16 %v2848
    %v2885 = vunpack.c.l.b16 %v2849
    %v2886 = vpack.c.b16 %v2871, %v2870
    %v2887 = vpack.c.b16 %v2873, %v2872
    %v2888 = vpack.c.b16 %v2875, %v2874
    %v2889 = vpack.c.b16 %v2877, %v2876
    %v2890 = vpack.c.b16 %v2879, %v2878
    %v2891 = vpack.c.b16 %v2881, %v2880
    %v2892 = vpack.c.b16 %v2883, %v2882
    %v2893 = vpack.c.b16 %v2885, %v2884
    %2902 = vmatpush.bf16.msra.mxu0 %v2893
    %2903 = vmatpush.bf16.msra.mxu0 %v2892
    %2904 = vmatpush.bf16.msra.mxu0 %v2891
    %2905 = vmatpush.bf16.msra.mxu0 %v2890
    %2906 = vmatpush.bf16.msra.mxu0 %v2889
    %2907 = vmatpush.bf16.msra.mxu0 %v2888
    %2908 = vmatpush.bf16.msra.mxu0 %v2887
    %2909 = vmatpush.bf16.msra.mxu0 %v2886
    %2910 = vmatmul.bf16.gmra.mxu0 %v2833
    %v2911 = vpop.f32.mrf.mxu0
    %v2912 = vadd.f32 %v2852, %v2911
    %v2913 = vpop.f32.mrf.mxu0
    %2914 = vdwg.mxu0
    %v2915 = vmax.f32 %v2912, 0.0
    %v2916 = vpack.c.bf16 %v2915, %v2915
    %v2917 = vld [vmem:[#allocation6] sm:$0xf]
    %v2918 = vld [vmem:[#allocation6 + $0x4] sm:$0xf]
    %v2919 = vld [vmem:[#allocation6 + $0x8] sm:$0xf]
    %v2920 = vld [vmem:[#allocation6 + $0xc] sm:$0xf]
    %v2921 = vld [vmem:[#allocation6 + $0x10] sm:$0xf]
    %v2922 = vld [vmem:[#allocation6 + $0x14] sm:$0xf]
    %v2923 = vld [vmem:[#allocation6 + $0x18] sm:$0xf]
    %v2924 = vld [vmem:[#allocation6 + $0x1c] sm:$0xf]
    %v2925 = vld [vmem:[#allocation6 + $0x20] sm:$0xf]
    %v2926 = vld [vmem:[#allocation6 + $0x24] sm:$0xf]
    %v2927 = vld [vmem:[#allocation6 + $0x28] sm:$0xf]
    %v2928 = vld [vmem:[#allocation6 + $0x2c] sm:$0xf]
    %v2929 = vld [vmem:[#allocation6 + $0x30] sm:$0xf]
    %v2930 = vld [vmem:[#allocation6 + $0x34] sm:$0xf]
    %v2931 = vld [vmem:[#allocation6 + $0x38] sm:$0xf]
    %v2932 = vld [vmem:[#allocation6 + $0x3c] sm:$0xf]
    %v2933 = vld [vmem:[%s12] sm:$0x1]
    %v2935 = vperm.slane %v2933, 0
    %v2953 = vunpack.c.l.b16 %v2917
    %v2954 = vunpack.c.l.b16 %v2918
    %v2955 = vunpack.c.l.b16 %v2919
    %v2956 = vunpack.c.l.b16 %v2920
    %v2957 = vunpack.c.l.b16 %v2921
    %v2958 = vunpack.c.l.b16 %v2922
    %v2959 = vunpack.c.l.b16 %v2923
    %v2960 = vunpack.c.l.b16 %v2924
    %v2961 = vunpack.c.l.b16 %v2925
    %v2962 = vunpack.c.l.b16 %v2926
    %v2963 = vunpack.c.l.b16 %v2927
    %v2964 = vunpack.c.l.b16 %v2928
    %v2965 = vunpack.c.l.b16 %v2929
    %v2966 = vunpack.c.l.b16 %v2930
    %v2967 = vunpack.c.l.b16 %v2931
    %v2968 = vunpack.c.l.b16 %v2932
    %v2969 = vpack.c.b16 %v2954, %v2953
    %v2970 = vpack.c.b16 %v2956, %v2955
    %v2971 = vpack.c.b16 %v2958, %v2957
    %v2972 = vpack.c.b16 %v2960, %v2959
    %v2973 = vpack.c.b16 %v2962, %v2961
    %v2974 = vpack.c.b16 %v2964, %v2963
    %v2975 = vpack.c.b16 %v2966, %v2965
    %v2976 = vpack.c.b16 %v2968, %v2967
    %2985 = vmatpush.bf16.msra.mxu0 %v2976
    %2986 = vmatpush.bf16.msra.mxu0 %v2975
    %2987 = vmatpush.bf16.msra.mxu0 %v2974
    %2988 = vmatpush.bf16.msra.mxu0 %v2973
    %2989 = vmatpush.bf16.msra.mxu0 %v2972
    %2990 = vmatpush.bf16.msra.mxu0 %v2971
    %2991 = vmatpush.bf16.msra.mxu0 %v2970
    %2992 = vmatpush.bf16.msra.mxu0 %v2969
    %2993 = vmatmul.bf16.gmra.mxu0 %v2916
    %v2994 = vpop.f32.mrf.mxu0
    %v2995 = vadd.f32 %v2935, %v2994
    %v2996 = vpop.f32.mrf.mxu0
    %2997 = vdwg.mxu0
    %2998 = vst [vmem:[%s13] sm:$0xff] %v2995
    // Predicated region
    $region66: #{ddqn_forward.1} parent=1 // pred_check
      _
    $region67: #{ddqn_forward.1} parent=1 // pred_check_branch
      %3000 = sbr.rel (0) target = $region69
    $region68: #{ddqn_forward.1} parent=1 // pred_region
      _
    $region69: #{ddqn_forward.1} parent=1 // pred_fallthru
      _
    // Predicated region
    $region70: #{ddqn_forward.1} parent=1 // pred_check
      _
    $region71: #{ddqn_forward.1} parent=1 // pred_check_branch
      %3002 = sbr.rel (0) target = $region73
    $region72: #{ddqn_forward.1} parent=1 // pred_region
      _
    $region73: #{ddqn_forward.1} parent=1 // pred_fallthru
      _
    %3003 = vsyncpa [#allocation3], 1
    %3004 = vsyncpa [#allocation5], 1

</llo_original>
